<compile_context>
chip_gen: v7x
topology: tpu7x:2x2x1
jax: 0.10.0
libtpu: 0.0.40
codegen_flags: <defaults>
</compile_context>

<pallas_src>
import jax
import jax.numpy as jnp
import numpy as np
from jax import lax
from jax.experimental import pallas as pl
from jax.experimental.pallas import tpu as pltpu

# ----------------- config (small synthetic shapes) -----------------
B = 2
IMAGE_SIZE = 4
S = IMAGE_SIZE * IMAGE_SIZE          # 16 tokens
E = 32                               # embed_dim
H = 4                                # num_heads
DH = E // H                          # head_embed_dim = 8
_rd = DH // 4
ROPE_DIM = _rd if _rd % 2 == 0 else max(2, _rd - _rd % 2)   # module logic -> 2
ROT_DIM = 2 * ROPE_DIM               # axial freqs over (h, w)  -> 4
SCALE = DH ** -0.5


# ----------------- RoPE frequency table (setup glue, plain JAX) -----------------
def make_axial_freqs(image_size, rope_dim):
    """rotary_embedding_torch: freqs_for='pixel', max_freq=image_size//2,
    get_axial_freqs(image_size, image_size) flattened to (S, 2*rope_dim)."""
    max_freq = image_size // 2
    n_base = rope_dim // 2
    base = jnp.linspace(1.0, max_freq / 2.0, n_base) * jnp.pi
    pos = jnp.linspace(-1.0, 1.0, image_size)
    f = pos[:, None] * base[None, :]                     # (img, n_base)
    f = jnp.repeat(f, 2, axis=-1)                        # interleave: [a,a,b,b,...]
    fh = jnp.broadcast_to(f[:, None, :], (image_size, image_size, rope_dim))
    fw = jnp.broadcast_to(f[None, :, :], (image_size, image_size, rope_dim))
    freqs = jnp.concatenate([fh, fw], axis=-1)           # (img, img, 2*rope_dim)
    return freqs.reshape(image_size * image_size, 2 * rope_dim).astype(jnp.float32)


def _head_perm():
    """Per-head column permutation: interleaved rotary dims -> half-split layout
    [even-rotary | pass | odd-rotary | pass] so that 'rotate-half' is a half-swap.
    perm[new] = old column index."""
    perm = np.empty(DH, np.int64)
    passthrough = list(range(ROT_DIM, DH))
    pi = 0
    for j in range(DH):
        if j < ROPE_DIM:
            perm[j] = 2 * j
        elif DH // 2 <= j < DH // 2 + ROPE_DIM:
            perm[j] = 2 * (j - DH // 2) + 1
        else:
            perm[j] = passthrough[pi]
            pi += 1
    return perm


# ----------------- chip-aware configuration -----------------
def _device_kind():
    try:
        return jax.devices()[0].device_kind.lower()
    except Exception:
        return ""


def _num_tensorcores(kind):
    # v7x has 2 TensorCores per chip; v4/v5p megacore also shard "parallel" grid axes.
    return 2 if any(t in kind for t in ("v7", "v4", "v5p")) else 1


def _is_v5e(kind):
    return ("v5e" in kind) or ("v5 lite" in kind) or ("v5lite" in kind)


# ----------------- Pallas kernel (one program per batch chunk) -----------------
def _rope_mhsa_kernel(x_ref, w5_ref, cos_ref, sin_ref, wp_ref, b_ref, o_ref, ctx_ref):
    f32, bf16 = jnp.float32, jnp.bfloat16
    n_rows = x_ref.shape[0]            # BB * S rows in this batch chunk
    G = w5_ref.shape[1] // 5           # lane stride between the 5 fused weight groups

    # Fused lane-dense projection for the whole batch chunk (one MXU call):
    #   groups = [q | k | v | q_rolled | k_rolled], scale + RoPE permutation pre-folded.
    x = x_ref[...].astype(bf16)                                      # (BB*S, E)
    qkv = jnp.dot(x, w5_ref[...], preferred_element_type=f32)        # (BB*S, 5G) f32

    cos = cos_ref[...]                                               # (BB*S, E) f32
    sin = sin_ref[...]                                               # (BB*S, E) f32 (signed)
    # RoPE is pure VPU mul/add; the rotate-half operand comes from the projection itself.
    q_f32 = qkv[:, 0 * G:0 * G + E] * cos + qkv[:, 3 * G:3 * G + E] * sin
    k_f32 = qkv[:, 1 * G:1 * G + E] * cos + qkv[:, 4 * G:4 * G + E] * sin
    q = q_f32.astype(bf16)
    v = qkv[:, 2 * G:2 * G + E].astype(bf16)

    for b in range(n_rows // S):                 # BB <= 2, static -> unrolled
        r0 = b * S
        q_b = q[r0:r0 + S]                       # (S, E) bf16, scale already folded in
        v_b = v[r0:r0 + S]                       # (S, E) bf16
        kT_b = k_f32[r0:r0 + S].T                # (E, S) f32: ONE transpose per batch elem
        for h in range(H):                       # H=4, static -> unrolled
            c0 = h * DH
            logits = jnp.dot(q_b[:, c0:c0 + DH], kT_b[c0:c0 + DH, :].astype(bf16),
                             preferred_element_type=f32)             # (S, S)
            m = jnp.max(logits, axis=-1, keepdims=True)
            e = jnp.exp(logits - m)
            denom = jnp.sum(e, axis=-1, keepdims=True)
            # TODO(synk): attn_drop is identity for attn_drop=0.0 (module default).
            ctx = jnp.dot(e.astype(bf16), v_b[:, c0:c0 + DH],
                          preferred_element_type=f32)                # (S, DH)
            # Normalise AFTER the PV matmul (fewer VPU muls; EUP recip off the MXU path).
            ctx = ctx * pl.reciprocal(denom, approx=True)
            ctx_ref[r0:r0 + S, c0:c0 + DH] = ctx.astype(bf16)        # lane scatter at h*DH

    # Single fused output projection for all heads & batch elements, plus bias.
    out = jnp.dot(ctx_ref[...], wp_ref[...], preferred_element_type=f32) + b_ref[...]
    o_ref[...] = out.astype(o_ref.dtype)


# ----------------- wrapper -----------------
def rope_mhsa_forward(x, w_qkv, w_proj, b_proj, freqs):
    Bn, Sn, En = x.shape
    assert (Sn, En) == (S, E)

    kind = _device_kind()
    n_prog = _num_tensorcores(kind)
    if Bn % n_prog != 0:
        n_prog = 1                               # avoid uneven batch split
    BB = Bn // n_prog
    # Weight-group lane stride: pad groups to 128-lane boundaries (lane-tile-aligned
    # slices downstream) except on v5e, where the review asked to keep compact N=5*E.
    G = En if (_is_v5e(kind) or En % 128 == 0) else ((En + 127) // 128) * 128

    # ---- setup glue (trace-time constant folding, tiny) ----
    wt = w_qkv.T                                      # (E, 3E); qkv = x @ w_qkv.T
    wq, wk, wv = wt[:, :En], wt[:, En:2 * En], wt[:, 2 * En:]

    perm = _head_perm()
    full_perm = np.concatenate([h * DH + perm for h in range(H)])
    roll_src = (np.arange(DH) + DH // 2) % DH         # half-swap within each head
    full_roll = np.concatenate([h * DH + roll_src for h in range(H)])

    wq_p = wq[:, full_perm] * SCALE                   # softmax scale folded into Wq
    wk_p = wk[:, full_perm]
    groups = [wq_p, wk_p, wv, wq_p[:, full_roll], wk_p[:, full_roll]]
    if G > En:
        zpad = jnp.zeros((En, G - En), jnp.float32)
        groups = [jnp.concatenate([g, zpad], axis=-1) for g in groups]
    w5 = jnp.concatenate(groups, axis=-1).astype(jnp.bfloat16)       # (E, 5G)

    # RoPE tables in the permuted per-head layout, tiled across heads and batch chunk.
    cosv, sinv = jnp.cos(freqs), jnp.sin(freqs)       # (S, ROT_DIM), interleaved pairs
    ones = jnp.ones((Sn,), jnp.float32)
    zeros = jnp.zeros((Sn,), jnp.float32)
    cos_cols, sin_cols = [], []
    for j in range(DH):
        if j < ROPE_DIM:
            cos_cols.append(cosv[:, 2 * j]); sin_cols.append(-sinv[:, 2 * j])
        elif DH // 2 <= j < DH // 2 + ROPE_DIM:
            jj = j - DH // 2
            cos_cols.append(cosv[:, 2 * jj + 1]); sin_cols.append(sinv[:, 2 * jj + 1])
        else:
            cos_cols.append(ones); sin_cols.append(zeros)
    cos_E = jnp.tile(jnp.stack(cos_cols, axis=-1), (1, H)).astype(jnp.float32)   # (S, E)
    sin_E = jnp.tile(jnp.stack(sin_cols, axis=-1), (1, H)).astype(jnp.float32)   # (S, E)
    cos_T = jnp.tile(cos_E, (BB, 1))                                             # (BB*S, E)
    sin_T = jnp.tile(sin_E, (BB, 1))

    wp = w_proj.T.astype(jnp.bfloat16)                # (E, E): out = ctx @ w_proj.T + b
    bp = b_proj.reshape(1, En).astype(jnp.float32)

    x2d = x.reshape(Bn * Sn, En)                      # contiguous reshape, free in XLA
    R = BB * Sn                                       # rows handled per program

    # TODO(synk): for production sequence lengths add flash-style KV tiling (online
    # softmax, Q-tile grid axis) sized against v7x's 64 MiB VMEM; and switch constant
    # operands to pipeline_mode=pl.Buffered(1) once their VMEM footprint matters.
    out2d = pl.pallas_call(
        _rope_mhsa_kernel,
        out_shape=jax.ShapeDtypeStruct((Bn * Sn, En), x.dtype),
        grid=(n_prog,),
        in_specs=[
            pl.BlockSpec((R, En), lambda p: (p, 0)),        # x rows of this batch chunk
            pl.BlockSpec((En, 5 * G), lambda p: (0, 0)),    # fused qkv(+rolled) weights
            pl.BlockSpec((R, En), lambda p: (0, 0)),        # cos table (tiled to chunk)
            pl.BlockSpec((R, En), lambda p: (0, 0)),        # signed sin table
            pl.BlockSpec((En, En), lambda p: (0, 0)),       # output projection weight
            pl.BlockSpec((1, En), lambda p: (0, 0)),        # output projection bias
        ],
        out_specs=pl.BlockSpec((R, En), lambda p: (p, 0)),  # lane-dense (rows, E) store
        scratch_shapes=[pltpu.VMEM((R, En), jnp.bfloat16)], # per-head ctx scatter buffer
        compiler_params=pltpu.CompilerParams(dimension_semantics=("parallel",)),
    )(x2d, w5, cos_T, sin_T, wp, bp)
    # proj_drop is identity for proj_drop=0.0 (module default).
    return out2d.reshape(Bn, Sn, En)


# ----------------- pure-JAX reference (mirrors the PyTorch forward, f32 HIGHEST) -----------------
def reference(x, w_qkv, w_proj, b_proj, freqs):
    hp = lax.Precision.HIGHEST
    Bn, Sn, En = x.shape
    qkv = jnp.einsum('bse,fe->bsf', x, w_qkv, precision=hp)
    qkv = qkv.reshape(Bn, Sn, 3, H, DH).transpose(2, 0, 3, 1, 4)
    q, k, v = qkv[0], qkv[1], qkv[2]                                   # (B,H,S,DH)
    cos = jnp.cos(freqs)
    sin = jnp.sin(freqs)

    def rope(t):
        tm, tr = t[..., :ROT_DIM], t[..., ROT_DIM:]
        pairs = tm.reshape(tm.shape[:-1] + (ROT_DIM // 2, 2))
        rh = jnp.stack([-pairs[..., 1], pairs[..., 0]], axis=-1).reshape(tm.shape)
        return jnp.concatenate([tm * cos + rh * sin, tr], axis=-1)

    q, k = rope(q), rope(k)
    attn = jnp.einsum('bhqd,bhkd->bhqk', q, k, precision=hp) * SCALE
    attn = jax.nn.softmax(attn, axis=-1)
    out = jnp.einsum('bhqk,bhkd->bhqd', attn, v, precision=hp)
    out = out.transpose(0, 2, 1, 3).reshape(Bn, Sn, En)
    return jnp.einsum('bse,fe->bsf', out, w_proj, precision=hp) + b_proj


# ----------------- main -----------------
if __name__ == "__main__":
    key = jax.random.PRNGKey(0)
    k1, k2, k3, k4 = jax.random.split(key, 4)
    x = jax.random.normal(k1, (B, S, E), jnp.float32)
    # Deterministic synthetic parameters (PyTorch Linear weight shapes).
    w_qkv = 0.1 * jax.random.normal(k2, (3 * E, E), jnp.float32)   # qkv_proj.weight, no bias
    w_proj = 0.1 * jax.random.normal(k3, (E, E), jnp.float32)      # proj.weight
    b_proj = 0.1 * jax.random.normal(k4, (E,), jnp.float32)        # proj.bias
    freqs = make_axial_freqs(IMAGE_SIZE, ROPE_DIM)                 # (S, ROT_DIM)

    out = jax.block_until_ready(rope_mhsa_forward(x, w_qkv, w_proj, b_proj, freqs))
    ref = jax.block_until_ready(reference(x, w_qkv, w_proj, b_proj, freqs))

    assert out.shape == (B, S, E)
    # bf16 MXU inputs + approx reciprocal vs. f32 HIGHEST reference -> relaxed tolerance.
    np.testing.assert_allclose(np.asarray(out), np.asarray(ref), rtol=5e-2, atol=5e-2)
    print("KERNEL_OK")
</pallas_src>

<mosaic_0001>
module attributes {stable_mosaic.version = 11 : i64} {
  func.func @_rope_mhsa_kernel(%arg0: i32, %arg1: memref<32x32xf32, #tpu.memory_space<vmem>>, %arg2: memref<32x640xbf16, #tpu.memory_space<vmem>>, %arg3: memref<32x32xf32, #tpu.memory_space<vmem>>, %arg4: memref<32x32xf32, #tpu.memory_space<vmem>>, %arg5: memref<32x32xbf16, #tpu.memory_space<vmem>>, %arg6: memref<1x32xf32, #tpu.memory_space<vmem>>, %arg7: memref<32x32xf32, #tpu.memory_space<vmem>>, %arg8: memref<32x32xbf16, #tpu.memory_space<vmem>>) attributes {dimension_semantics = [#tpu.dimension_semantics<parallel>], iteration_bounds = array<i64: 1>, scalar_prefetch = 0 : i64, scratch_operands = 1 : i64, tpu.core_type = #tpu.core_type<tc>, window_params = [{transform_indices = @transform_0, window_bounds = array<i64: 32, 32>}, {pipeline_mode = #tpu.pipeline_mode<synchronous>, transform_indices = @transform_1, window_bounds = array<i64: 32, 640>}, {pipeline_mode = #tpu.pipeline_mode<synchronous>, transform_indices = @transform_2, window_bounds = array<i64: 32, 32>}, {pipeline_mode = #tpu.pipeline_mode<synchronous>, transform_indices = @transform_3, window_bounds = array<i64: 32, 32>}, {pipeline_mode = #tpu.pipeline_mode<synchronous>, transform_indices = @transform_4, window_bounds = array<i64: 32, 32>}, {pipeline_mode = #tpu.pipeline_mode<synchronous>, transform_indices = @transform_5, window_bounds = array<i64: 1, 32>}, {transform_indices = @transform_6, window_bounds = array<i64: 32, 32>}]} {
    %c0 = arith.constant 0 : index
    %c0_0 = arith.constant 0 : index
    %0 = vector.load %arg1[%c0, %c0_0] : memref<32x32xf32, #tpu.memory_space<vmem>>, vector<32x32xf32>
    %1 = arith.truncf %0 : vector<32x32xf32> to vector<32x32xbf16>
    %c0_1 = arith.constant 0 : index
    %c0_2 = arith.constant 0 : index
    %2 = vector.load %arg2[%c0_1, %c0_2] : memref<32x640xbf16, #tpu.memory_space<vmem>>, vector<32x640xbf16>
    %cst = arith.constant dense<0.000000e+00> : vector<32x640xf32>
    %3 = tpu.matmul %1, %2, %cst {dimension_numbers = #tpu.dot_dimension_numbers<[1], [0], [0], [1], [0, 0, 1, 1], [], []>} : vector<32x32xbf16>, vector<32x640xbf16>, vector<32x640xf32> -> vector<32x640xf32>
    %c0_3 = arith.constant 0 : index
    %c0_4 = arith.constant 0 : index
    %4 = vector.load %arg3[%c0_3, %c0_4] : memref<32x32xf32, #tpu.memory_space<vmem>>, vector<32x32xf32>
    %c0_5 = arith.constant 0 : index
    %c0_6 = arith.constant 0 : index
    %5 = vector.load %arg4[%c0_5, %c0_6] : memref<32x32xf32, #tpu.memory_space<vmem>>, vector<32x32xf32>
    %6 = vector.extract_strided_slice %3 {offsets = [0, 0], sizes = [32, 32], strides = [1, 1]} : vector<32x640xf32> to vector<32x32xf32>
    %7 = arith.mulf %6, %4 : vector<32x32xf32>
    %8 = vector.extract_strided_slice %3 {offsets = [0, 384], sizes = [32, 32], strides = [1, 1]} : vector<32x640xf32> to vector<32x32xf32>
    %9 = arith.mulf %8, %5 : vector<32x32xf32>
    %10 = arith.addf %7, %9 : vector<32x32xf32>
    %11 = vector.extract_strided_slice %3 {offsets = [0, 128], sizes = [32, 32], strides = [1, 1]} : vector<32x640xf32> to vector<32x32xf32>
    %12 = arith.mulf %11, %4 : vector<32x32xf32>
    %13 = vector.extract_strided_slice %3 {offsets = [0, 512], sizes = [32, 32], strides = [1, 1]} : vector<32x640xf32> to vector<32x32xf32>
    %14 = arith.mulf %13, %5 : vector<32x32xf32>
    %15 = arith.addf %12, %14 : vector<32x32xf32>
    %16 = arith.truncf %10 : vector<32x32xf32> to vector<32x32xbf16>
    %17 = vector.extract_strided_slice %3 {offsets = [0, 256], sizes = [32, 32], strides = [1, 1]} : vector<32x640xf32> to vector<32x32xf32>
    %18 = arith.truncf %17 : vector<32x32xf32> to vector<32x32xbf16>
    %19 = vector.extract_strided_slice %16 {offsets = [0, 0], sizes = [16, 32], strides = [1, 1]} : vector<32x32xbf16> to vector<16x32xbf16>
    %20 = vector.extract_strided_slice %18 {offsets = [0, 0], sizes = [16, 32], strides = [1, 1]} : vector<32x32xbf16> to vector<16x32xbf16>
    %21 = vector.extract_strided_slice %15 {offsets = [0, 0], sizes = [16, 32], strides = [1, 1]} : vector<32x32xf32> to vector<16x32xf32>
    %22 = tpu.transpose %21, [1, 0] : vector<16x32xf32> -> vector<32x16xf32>
    %23 = vector.extract_strided_slice %19 {offsets = [0, 0], sizes = [16, 8], strides = [1, 1]} : vector<16x32xbf16> to vector<16x8xbf16>
    %24 = vector.extract_strided_slice %22 {offsets = [0, 0], sizes = [8, 16], strides = [1, 1]} : vector<32x16xf32> to vector<8x16xf32>
    %25 = arith.truncf %24 : vector<8x16xf32> to vector<8x16xbf16>
    %cst_7 = arith.constant dense<0.000000e+00> : vector<16x16xf32>
    %26 = tpu.matmul %23, %25, %cst_7 {dimension_numbers = #tpu.dot_dimension_numbers<[1], [0], [0], [1], [0, 0, 1, 1], [], []>} : vector<16x8xbf16>, vector<8x16xbf16>, vector<16x16xf32> -> vector<16x16xf32>
    %cst_8 = arith.constant dense<0xFF800000> : vector<16xf32>
    %27 = vector.multi_reduction <maximumf>, %26, %cst_8 [1] : vector<16x16xf32> to vector<16xf32>
    %28 = vector.shape_cast %27 : vector<16xf32> to vector<16x1xf32>
    %29 = vector.broadcast %28 : vector<16x1xf32> to vector<16x16xf32>
    %30 = arith.subf %26, %29 : vector<16x16xf32>
    %31 = math.exp %30 : vector<16x16xf32>
    %cst_9 = arith.constant dense<0.000000e+00> : vector<16xf32>
    %32 = vector.multi_reduction <add>, %31, %cst_9 [1] : vector<16x16xf32> to vector<16xf32>
    %33 = vector.shape_cast %32 : vector<16xf32> to vector<16x1xf32>
    %34 = arith.truncf %31 : vector<16x16xf32> to vector<16x16xbf16>
    %35 = vector.extract_strided_slice %20 {offsets = [0, 0], sizes = [16, 8], strides = [1, 1]} : vector<16x32xbf16> to vector<16x8xbf16>
    %cst_10 = arith.constant dense<0.000000e+00> : vector<16x8xf32>
    %36 = tpu.matmul %34, %35, %cst_10 {dimension_numbers = #tpu.dot_dimension_numbers<[1], [0], [0], [1], [0, 0, 1, 1], [], []>} : vector<16x16xbf16>, vector<16x8xbf16>, vector<16x8xf32> -> vector<16x8xf32>
    %37 = tpu.reciprocal %33 {approx = true} : vector<16x1xf32> -> vector<16x1xf32>
    %38 = vector.broadcast %37 : vector<16x1xf32> to vector<16x8xf32>
    %39 = arith.mulf %36, %38 : vector<16x8xf32>
    %40 = arith.truncf %39 : vector<16x8xf32> to vector<16x8xbf16>
    %c0_11 = arith.constant 0 : index
    %c0_12 = arith.constant 0 : index
    %41 = vector.load %arg8[%c0_11, %c0_12] : memref<32x32xbf16, #tpu.memory_space<vmem>>, vector<16x8xbf16>
    tpu.vector_store %arg8[%c0_11, %c0_12], %40 {strides = array<i32>} : memref<32x32xbf16, #tpu.memory_space<vmem>>, vector<16x8xbf16>,
    %42 = vector.extract_strided_slice %19 {offsets = [0, 8], sizes = [16, 8], strides = [1, 1]} : vector<16x32xbf16> to vector<16x8xbf16>
    %43 = vector.extract_strided_slice %22 {offsets = [8, 0], sizes = [8, 16], strides = [1, 1]} : vector<32x16xf32> to vector<8x16xf32>
    %44 = arith.truncf %43 : vector<8x16xf32> to vector<8x16xbf16>
    %cst_13 = arith.constant dense<0.000000e+00> : vector<16x16xf32>
    %45 = tpu.matmul %42, %44, %cst_13 {dimension_numbers = #tpu.dot_dimension_numbers<[1], [0], [0], [1], [0, 0, 1, 1], [], []>} : vector<16x8xbf16>, vector<8x16xbf16>, vector<16x16xf32> -> vector<16x16xf32>
    %cst_14 = arith.constant dense<0xFF800000> : vector<16xf32>
    %46 = vector.multi_reduction <maximumf>, %45, %cst_14 [1] : vector<16x16xf32> to vector<16xf32>
    %47 = vector.shape_cast %46 : vector<16xf32> to vector<16x1xf32>
    %48 = vector.broadcast %47 : vector<16x1xf32> to vector<16x16xf32>
    %49 = arith.subf %45, %48 : vector<16x16xf32>
    %50 = math.exp %49 : vector<16x16xf32>
    %cst_15 = arith.constant dense<0.000000e+00> : vector<16xf32>
    %51 = vector.multi_reduction <add>, %50, %cst_15 [1] : vector<16x16xf32> to vector<16xf32>
    %52 = vector.shape_cast %51 : vector<16xf32> to vector<16x1xf32>
    %53 = arith.truncf %50 : vector<16x16xf32> to vector<16x16xbf16>
    %54 = vector.extract_strided_slice %20 {offsets = [0, 8], sizes = [16, 8], strides = [1, 1]} : vector<16x32xbf16> to vector<16x8xbf16>
    %cst_16 = arith.constant dense<0.000000e+00> : vector<16x8xf32>
    %55 = tpu.matmul %53, %54, %cst_16 {dimension_numbers = #tpu.dot_dimension_numbers<[1], [0], [0], [1], [0, 0, 1, 1], [], []>} : vector<16x16xbf16>, vector<16x8xbf16>, vector<16x8xf32> -> vector<16x8xf32>
    %56 = tpu.reciprocal %52 {approx = true} : vector<16x1xf32> -> vector<16x1xf32>
    %57 = vector.broadcast %56 : vector<16x1xf32> to vector<16x8xf32>
    %58 = arith.mulf %55, %57 : vector<16x8xf32>
    %59 = arith.truncf %58 : vector<16x8xf32> to vector<16x8xbf16>
    %c0_17 = arith.constant 0 : index
    %c8 = arith.constant 8 : index
    %60 = vector.load %arg8[%c0_17, %c8] : memref<32x32xbf16, #tpu.memory_space<vmem>>, vector<16x8xbf16>
    tpu.vector_store %arg8[%c0_17, %c8], %59 {strides = array<i32>} : memref<32x32xbf16, #tpu.memory_space<vmem>>, vector<16x8xbf16>,
    %61 = vector.extract_strided_slice %19 {offsets = [0, 16], sizes = [16, 8], strides = [1, 1]} : vector<16x32xbf16> to vector<16x8xbf16>
    %62 = vector.extract_strided_slice %22 {offsets = [16, 0], sizes = [8, 16], strides = [1, 1]} : vector<32x16xf32> to vector<8x16xf32>
    %63 = arith.truncf %62 : vector<8x16xf32> to vector<8x16xbf16>
    %cst_18 = arith.constant dense<0.000000e+00> : vector<16x16xf32>
    %64 = tpu.matmul %61, %63, %cst_18 {dimension_numbers = #tpu.dot_dimension_numbers<[1], [0], [0], [1], [0, 0, 1, 1], [], []>} : vector<16x8xbf16>, vector<8x16xbf16>, vector<16x16xf32> -> vector<16x16xf32>
    %cst_19 = arith.constant dense<0xFF800000> : vector<16xf32>
    %65 = vector.multi_reduction <maximumf>, %64, %cst_19 [1] : vector<16x16xf32> to vector<16xf32>
    %66 = vector.shape_cast %65 : vector<16xf32> to vector<16x1xf32>
    %67 = vector.broadcast %66 : vector<16x1xf32> to vector<16x16xf32>
    %68 = arith.subf %64, %67 : vector<16x16xf32>
    %69 = math.exp %68 : vector<16x16xf32>
    %cst_20 = arith.constant dense<0.000000e+00> : vector<16xf32>
    %70 = vector.multi_reduction <add>, %69, %cst_20 [1] : vector<16x16xf32> to vector<16xf32>
    %71 = vector.shape_cast %70 : vector<16xf32> to vector<16x1xf32>
    %72 = arith.truncf %69 : vector<16x16xf32> to vector<16x16xbf16>
    %73 = vector.extract_strided_slice %20 {offsets = [0, 16], sizes = [16, 8], strides = [1, 1]} : vector<16x32xbf16> to vector<16x8xbf16>
    %cst_21 = arith.constant dense<0.000000e+00> : vector<16x8xf32>
    %74 = tpu.matmul %72, %73, %cst_21 {dimension_numbers = #tpu.dot_dimension_numbers<[1], [0], [0], [1], [0, 0, 1, 1], [], []>} : vector<16x16xbf16>, vector<16x8xbf16>, vector<16x8xf32> -> vector<16x8xf32>
    %75 = tpu.reciprocal %71 {approx = true} : vector<16x1xf32> -> vector<16x1xf32>
    %76 = vector.broadcast %75 : vector<16x1xf32> to vector<16x8xf32>
    %77 = arith.mulf %74, %76 : vector<16x8xf32>
    %78 = arith.truncf %77 : vector<16x8xf32> to vector<16x8xbf16>
    %c0_22 = arith.constant 0 : index
    %c16 = arith.constant 16 : index
    %79 = vector.load %arg8[%c0_22, %c16] : memref<32x32xbf16, #tpu.memory_space<vmem>>, vector<16x8xbf16>
    tpu.vector_store %arg8[%c0_22, %c16], %78 {strides = array<i32>} : memref<32x32xbf16, #tpu.memory_space<vmem>>, vector<16x8xbf16>,
    %80 = vector.extract_strided_slice %19 {offsets = [0, 24], sizes = [16, 8], strides = [1, 1]} : vector<16x32xbf16> to vector<16x8xbf16>
    %81 = vector.extract_strided_slice %22 {offsets = [24, 0], sizes = [8, 16], strides = [1, 1]} : vector<32x16xf32> to vector<8x16xf32>
    %82 = arith.truncf %81 : vector<8x16xf32> to vector<8x16xbf16>
    %cst_23 = arith.constant dense<0.000000e+00> : vector<16x16xf32>
    %83 = tpu.matmul %80, %82, %cst_23 {dimension_numbers = #tpu.dot_dimension_numbers<[1], [0], [0], [1], [0, 0, 1, 1], [], []>} : vector<16x8xbf16>, vector<8x16xbf16>, vector<16x16xf32> -> vector<16x16xf32>
    %cst_24 = arith.constant dense<0xFF800000> : vector<16xf32>
    %84 = vector.multi_reduction <maximumf>, %83, %cst_24 [1] : vector<16x16xf32> to vector<16xf32>
    %85 = vector.shape_cast %84 : vector<16xf32> to vector<16x1xf32>
    %86 = vector.broadcast %85 : vector<16x1xf32> to vector<16x16xf32>
    %87 = arith.subf %83, %86 : vector<16x16xf32>
    %88 = math.exp %87 : vector<16x16xf32>
    %cst_25 = arith.constant dense<0.000000e+00> : vector<16xf32>
    %89 = vector.multi_reduction <add>, %88, %cst_25 [1] : vector<16x16xf32> to vector<16xf32>
    %90 = vector.shape_cast %89 : vector<16xf32> to vector<16x1xf32>
    %91 = arith.truncf %88 : vector<16x16xf32> to vector<16x16xbf16>
    %92 = vector.extract_strided_slice %20 {offsets = [0, 24], sizes = [16, 8], strides = [1, 1]} : vector<16x32xbf16> to vector<16x8xbf16>
    %cst_26 = arith.constant dense<0.000000e+00> : vector<16x8xf32>
    %93 = tpu.matmul %91, %92, %cst_26 {dimension_numbers = #tpu.dot_dimension_numbers<[1], [0], [0], [1], [0, 0, 1, 1], [], []>} : vector<16x16xbf16>, vector<16x8xbf16>, vector<16x8xf32> -> vector<16x8xf32>
    %94 = tpu.reciprocal %90 {approx = true} : vector<16x1xf32> -> vector<16x1xf32>
    %95 = vector.broadcast %94 : vector<16x1xf32> to vector<16x8xf32>
    %96 = arith.mulf %93, %95 : vector<16x8xf32>
    %97 = arith.truncf %96 : vector<16x8xf32> to vector<16x8xbf16>
    %c0_27 = arith.constant 0 : index
    %c24 = arith.constant 24 : index
    %98 = vector.load %arg8[%c0_27, %c24] : memref<32x32xbf16, #tpu.memory_space<vmem>>, vector<16x8xbf16>
    tpu.vector_store %arg8[%c0_27, %c24], %97 {strides = array<i32>} : memref<32x32xbf16, #tpu.memory_space<vmem>>, vector<16x8xbf16>,
    %99 = vector.extract_strided_slice %16 {offsets = [16, 0], sizes = [16, 32], strides = [1, 1]} : vector<32x32xbf16> to vector<16x32xbf16>
    %100 = vector.extract_strided_slice %18 {offsets = [16, 0], sizes = [16, 32], strides = [1, 1]} : vector<32x32xbf16> to vector<16x32xbf16>
    %101 = vector.extract_strided_slice %15 {offsets = [16, 0], sizes = [16, 32], strides = [1, 1]} : vector<32x32xf32> to vector<16x32xf32>
    %102 = tpu.transpose %101, [1, 0] : vector<16x32xf32> -> vector<32x16xf32>
    %103 = vector.extract_strided_slice %99 {offsets = [0, 0], sizes = [16, 8], strides = [1, 1]} : vector<16x32xbf16> to vector<16x8xbf16>
    %104 = vector.extract_strided_slice %102 {offsets = [0, 0], sizes = [8, 16], strides = [1, 1]} : vector<32x16xf32> to vector<8x16xf32>
    %105 = arith.truncf %104 : vector<8x16xf32> to vector<8x16xbf16>
    %cst_28 = arith.constant dense<0.000000e+00> : vector<16x16xf32>
    %106 = tpu.matmul %103, %105, %cst_28 {dimension_numbers = #tpu.dot_dimension_numbers<[1], [0], [0], [1], [0, 0, 1, 1], [], []>} : vector<16x8xbf16>, vector<8x16xbf16>, vector<16x16xf32> -> vector<16x16xf32>
    %cst_29 = arith.constant dense<0xFF800000> : vector<16xf32>
    %107 = vector.multi_reduction <maximumf>, %106, %cst_29 [1] : vector<16x16xf32> to vector<16xf32>
    %108 = vector.shape_cast %107 : vector<16xf32> to vector<16x1xf32>
    %109 = vector.broadcast %108 : vector<16x1xf32> to vector<16x16xf32>
    %110 = arith.subf %106, %109 : vector<16x16xf32>
    %111 = math.exp %110 : vector<16x16xf32>
    %cst_30 = arith.constant dense<0.000000e+00> : vector<16xf32>
    %112 = vector.multi_reduction <add>, %111, %cst_30 [1] : vector<16x16xf32> to vector<16xf32>
    %113 = vector.shape_cast %112 : vector<16xf32> to vector<16x1xf32>
    %114 = arith.truncf %111 : vector<16x16xf32> to vector<16x16xbf16>
    %115 = vector.extract_strided_slice %100 {offsets = [0, 0], sizes = [16, 8], strides = [1, 1]} : vector<16x32xbf16> to vector<16x8xbf16>
    %cst_31 = arith.constant dense<0.000000e+00> : vector<16x8xf32>
    %116 = tpu.matmul %114, %115, %cst_31 {dimension_numbers = #tpu.dot_dimension_numbers<[1], [0], [0], [1], [0, 0, 1, 1], [], []>} : vector<16x16xbf16>, vector<16x8xbf16>, vector<16x8xf32> -> vector<16x8xf32>
    %117 = tpu.reciprocal %113 {approx = true} : vector<16x1xf32> -> vector<16x1xf32>
    %118 = vector.broadcast %117 : vector<16x1xf32> to vector<16x8xf32>
    %119 = arith.mulf %116, %118 : vector<16x8xf32>
    %120 = arith.truncf %119 : vector<16x8xf32> to vector<16x8xbf16>
    %c16_32 = arith.constant 16 : index
    %c0_33 = arith.constant 0 : index
    %121 = vector.load %arg8[%c16_32, %c0_33] : memref<32x32xbf16, #tpu.memory_space<vmem>>, vector<16x8xbf16>
    tpu.vector_store %arg8[%c16_32, %c0_33], %120 {strides = array<i32>} : memref<32x32xbf16, #tpu.memory_space<vmem>>, vector<16x8xbf16>,
    %122 = vector.extract_strided_slice %99 {offsets = [0, 8], sizes = [16, 8], strides = [1, 1]} : vector<16x32xbf16> to vector<16x8xbf16>
    %123 = vector.extract_strided_slice %102 {offsets = [8, 0], sizes = [8, 16], strides = [1, 1]} : vector<32x16xf32> to vector<8x16xf32>
    %124 = arith.truncf %123 : vector<8x16xf32> to vector<8x16xbf16>
    %cst_34 = arith.constant dense<0.000000e+00> : vector<16x16xf32>
    %125 = tpu.matmul %122, %124, %cst_34 {dimension_numbers = #tpu.dot_dimension_numbers<[1], [0], [0], [1], [0, 0, 1, 1], [], []>} : vector<16x8xbf16>, vector<8x16xbf16>, vector<16x16xf32> -> vector<16x16xf32>
    %cst_35 = arith.constant dense<0xFF800000> : vector<16xf32>
    %126 = vector.multi_reduction <maximumf>, %125, %cst_35 [1] : vector<16x16xf32> to vector<16xf32>
    %127 = vector.shape_cast %126 : vector<16xf32> to vector<16x1xf32>
    %128 = vector.broadcast %127 : vector<16x1xf32> to vector<16x16xf32>
    %129 = arith.subf %125, %128 : vector<16x16xf32>
    %130 = math.exp %129 : vector<16x16xf32>
    %cst_36 = arith.constant dense<0.000000e+00> : vector<16xf32>
    %131 = vector.multi_reduction <add>, %130, %cst_36 [1] : vector<16x16xf32> to vector<16xf32>
    %132 = vector.shape_cast %131 : vector<16xf32> to vector<16x1xf32>
    %133 = arith.truncf %130 : vector<16x16xf32> to vector<16x16xbf16>
    %134 = vector.extract_strided_slice %100 {offsets = [0, 8], sizes = [16, 8], strides = [1, 1]} : vector<16x32xbf16> to vector<16x8xbf16>
    %cst_37 = arith.constant dense<0.000000e+00> : vector<16x8xf32>
    %135 = tpu.matmul %133, %134, %cst_37 {dimension_numbers = #tpu.dot_dimension_numbers<[1], [0], [0], [1], [0, 0, 1, 1], [], []>} : vector<16x16xbf16>, vector<16x8xbf16>, vector<16x8xf32> -> vector<16x8xf32>
    %136 = tpu.reciprocal %132 {approx = true} : vector<16x1xf32> -> vector<16x1xf32>
    %137 = vector.broadcast %136 : vector<16x1xf32> to vector<16x8xf32>
    %138 = arith.mulf %135, %137 : vector<16x8xf32>
    %139 = arith.truncf %138 : vector<16x8xf32> to vector<16x8xbf16>
    %c16_38 = arith.constant 16 : index
    %c8_39 = arith.constant 8 : index
    %140 = vector.load %arg8[%c16_38, %c8_39] : memref<32x32xbf16, #tpu.memory_space<vmem>>, vector<16x8xbf16>
    tpu.vector_store %arg8[%c16_38, %c8_39], %139 {strides = array<i32>} : memref<32x32xbf16, #tpu.memory_space<vmem>>, vector<16x8xbf16>,
    %141 = vector.extract_strided_slice %99 {offsets = [0, 16], sizes = [16, 8], strides = [1, 1]} : vector<16x32xbf16> to vector<16x8xbf16>
    %142 = vector.extract_strided_slice %102 {offsets = [16, 0], sizes = [8, 16], strides = [1, 1]} : vector<32x16xf32> to vector<8x16xf32>
    %143 = arith.truncf %142 : vector<8x16xf32> to vector<8x16xbf16>
    %cst_40 = arith.constant dense<0.000000e+00> : vector<16x16xf32>
    %144 = tpu.matmul %141, %143, %cst_40 {dimension_numbers = #tpu.dot_dimension_numbers<[1], [0], [0], [1], [0, 0, 1, 1], [], []>} : vector<16x8xbf16>, vector<8x16xbf16>, vector<16x16xf32> -> vector<16x16xf32>
    %cst_41 = arith.constant dense<0xFF800000> : vector<16xf32>
    %145 = vector.multi_reduction <maximumf>, %144, %cst_41 [1] : vector<16x16xf32> to vector<16xf32>
    %146 = vector.shape_cast %145 : vector<16xf32> to vector<16x1xf32>
    %147 = vector.broadcast %146 : vector<16x1xf32> to vector<16x16xf32>
    %148 = arith.subf %144, %147 : vector<16x16xf32>
    %149 = math.exp %148 : vector<16x16xf32>
    %cst_42 = arith.constant dense<0.000000e+00> : vector<16xf32>
    %150 = vector.multi_reduction <add>, %149, %cst_42 [1] : vector<16x16xf32> to vector<16xf32>
    %151 = vector.shape_cast %150 : vector<16xf32> to vector<16x1xf32>
    %152 = arith.truncf %149 : vector<16x16xf32> to vector<16x16xbf16>
    %153 = vector.extract_strided_slice %100 {offsets = [0, 16], sizes = [16, 8], strides = [1, 1]} : vector<16x32xbf16> to vector<16x8xbf16>
    %cst_43 = arith.constant dense<0.000000e+00> : vector<16x8xf32>
    %154 = tpu.matmul %152, %153, %cst_43 {dimension_numbers = #tpu.dot_dimension_numbers<[1], [0], [0], [1], [0, 0, 1, 1], [], []>} : vector<16x16xbf16>, vector<16x8xbf16>, vector<16x8xf32> -> vector<16x8xf32>
    %155 = tpu.reciprocal %151 {approx = true} : vector<16x1xf32> -> vector<16x1xf32>
    %156 = vector.broadcast %155 : vector<16x1xf32> to vector<16x8xf32>
    %157 = arith.mulf %154, %156 : vector<16x8xf32>
    %158 = arith.truncf %157 : vector<16x8xf32> to vector<16x8xbf16>
    %c16_44 = arith.constant 16 : index
    %c16_45 = arith.constant 16 : index
    %159 = vector.load %arg8[%c16_44, %c16_45] : memref<32x32xbf16, #tpu.memory_space<vmem>>, vector<16x8xbf16>
    tpu.vector_store %arg8[%c16_44, %c16_45], %158 {strides = array<i32>} : memref<32x32xbf16, #tpu.memory_space<vmem>>, vector<16x8xbf16>,
    %160 = vector.extract_strided_slice %99 {offsets = [0, 24], sizes = [16, 8], strides = [1, 1]} : vector<16x32xbf16> to vector<16x8xbf16>
    %161 = vector.extract_strided_slice %102 {offsets = [24, 0], sizes = [8, 16], strides = [1, 1]} : vector<32x16xf32> to vector<8x16xf32>
    %162 = arith.truncf %161 : vector<8x16xf32> to vector<8x16xbf16>
    %cst_46 = arith.constant dense<0.000000e+00> : vector<16x16xf32>
    %163 = tpu.matmul %160, %162, %cst_46 {dimension_numbers = #tpu.dot_dimension_numbers<[1], [0], [0], [1], [0, 0, 1, 1], [], []>} : vector<16x8xbf16>, vector<8x16xbf16>, vector<16x16xf32> -> vector<16x16xf32>
    %cst_47 = arith.constant dense<0xFF800000> : vector<16xf32>
    %164 = vector.multi_reduction <maximumf>, %163, %cst_47 [1] : vector<16x16xf32> to vector<16xf32>
    %165 = vector.shape_cast %164 : vector<16xf32> to vector<16x1xf32>
    %166 = vector.broadcast %165 : vector<16x1xf32> to vector<16x16xf32>
    %167 = arith.subf %163, %166 : vector<16x16xf32>
    %168 = math.exp %167 : vector<16x16xf32>
    %cst_48 = arith.constant dense<0.000000e+00> : vector<16xf32>
    %169 = vector.multi_reduction <add>, %168, %cst_48 [1] : vector<16x16xf32> to vector<16xf32>
    %170 = vector.shape_cast %169 : vector<16xf32> to vector<16x1xf32>
    %171 = arith.truncf %168 : vector<16x16xf32> to vector<16x16xbf16>
    %172 = vector.extract_strided_slice %100 {offsets = [0, 24], sizes = [16, 8], strides = [1, 1]} : vector<16x32xbf16> to vector<16x8xbf16>
    %cst_49 = arith.constant dense<0.000000e+00> : vector<16x8xf32>
    %173 = tpu.matmul %171, %172, %cst_49 {dimension_numbers = #tpu.dot_dimension_numbers<[1], [0], [0], [1], [0, 0, 1, 1], [], []>} : vector<16x16xbf16>, vector<16x8xbf16>, vector<16x8xf32> -> vector<16x8xf32>
    %174 = tpu.reciprocal %170 {approx = true} : vector<16x1xf32> -> vector<16x1xf32>
    %175 = vector.broadcast %174 : vector<16x1xf32> to vector<16x8xf32>
    %176 = arith.mulf %173, %175 : vector<16x8xf32>
    %177 = arith.truncf %176 : vector<16x8xf32> to vector<16x8xbf16>
    %c16_50 = arith.constant 16 : index
    %c24_51 = arith.constant 24 : index
    %178 = vector.load %arg8[%c16_50, %c24_51] : memref<32x32xbf16, #tpu.memory_space<vmem>>, vector<16x8xbf16>
    tpu.vector_store %arg8[%c16_50, %c24_51], %177 {strides = array<i32>} : memref<32x32xbf16, #tpu.memory_space<vmem>>, vector<16x8xbf16>,
    %c0_52 = arith.constant 0 : index
    %c0_53 = arith.constant 0 : index
    %179 = vector.load %arg8[%c0_52, %c0_53] : memref<32x32xbf16, #tpu.memory_space<vmem>>, vector<32x32xbf16>
    %c0_54 = arith.constant 0 : index
    %c0_55 = arith.constant 0 : index
    %180 = vector.load %arg5[%c0_54, %c0_55] : memref<32x32xbf16, #tpu.memory_space<vmem>>, vector<32x32xbf16>
    %cst_56 = arith.constant dense<0.000000e+00> : vector<32x32xf32>
    %181 = tpu.matmul %179, %180, %cst_56 {dimension_numbers = #tpu.dot_dimension_numbers<[1], [0], [0], [1], [0, 0, 1, 1], [], []>} : vector<32x32xbf16>, vector<32x32xbf16>, vector<32x32xf32> -> vector<32x32xf32>
    %c0_57 = arith.constant 0 : index
    %c0_58 = arith.constant 0 : index
    %182 = vector.load %arg6[%c0_57, %c0_58] : memref<1x32xf32, #tpu.memory_space<vmem>>, vector<1x32xf32>
    %183 = vector.broadcast %182 : vector<1x32xf32> to vector<32x32xf32>
    %184 = arith.addf %181, %183 : vector<32x32xf32>
    %c0_59 = arith.constant 0 : index
    %c0_60 = arith.constant 0 : index
    %185 = vector.load %arg7[%c0_59, %c0_60] : memref<32x32xf32, #tpu.memory_space<vmem>>, vector<32x32xf32>
    tpu.vector_store %arg7[%c0_59, %c0_60], %184 {strides = array<i32>} : memref<32x32xf32, #tpu.memory_space<vmem>>, vector<32x32xf32>,
    return
  }
  func.func @transform_0(%arg0: i32) -> (i32, i32) {
    %c0_i32 = arith.constant 0 : i32
    %c0_i32_0 = arith.constant 0 : i32
    return %arg0, %c0_i32 : i32, i32
  }
  func.func @transform_1(%arg0: i32) -> (i32, i32) {
    %c0_i32 = arith.constant 0 : i32
    %c0_i32_0 = arith.constant 0 : i32
    %c0_i32_1 = arith.constant 0 : i32
    return %c0_i32, %c0_i32_0 : i32, i32
  }
  func.func @transform_2(%arg0: i32) -> (i32, i32) {
    %c0_i32 = arith.constant 0 : i32
    %c0_i32_0 = arith.constant 0 : i32
    %c0_i32_1 = arith.constant 0 : i32
    return %c0_i32, %c0_i32_0 : i32, i32
  }
  func.func @transform_3(%arg0: i32) -> (i32, i32) {
    %c0_i32 = arith.constant 0 : i32
    %c0_i32_0 = arith.constant 0 : i32
    %c0_i32_1 = arith.constant 0 : i32
    return %c0_i32, %c0_i32_0 : i32, i32
  }
  func.func @transform_4(%arg0: i32) -> (i32, i32) {
    %c0_i32 = arith.constant 0 : i32
    %c0_i32_0 = arith.constant 0 : i32
    %c0_i32_1 = arith.constant 0 : i32
    return %c0_i32, %c0_i32_0 : i32, i32
  }
  func.func @transform_5(%arg0: i32) -> (i32, i32) {
    %c0_i32 = arith.constant 0 : i32
    %c0_i32_0 = arith.constant 0 : i32
    %c0_i32_1 = arith.constant 0 : i32
    return %c0_i32, %c0_i32_0 : i32, i32
  }
  func.func @transform_6(%arg0: i32) -> (i32, i32) {
    %c0_i32 = arith.constant 0 : i32
    %c0_i32_0 = arith.constant 0 : i32
    return %arg0, %c0_i32 : i32, i32
  }
}

</mosaic_0001>

<llo_original>
// kernel: tpu_custom_call.1
$region0: #{tpu_custom_call.1}
  #allocation0 [shape = 'u32[]', space=smem, size = 0x4, offset = 0x4, fixed_abs, tag = 'smem constant byte address 0x4 - core index']
  #allocation1 [shape = 'u32[144,128]{1,0:T(1,128)}', space=vmem, size = 0x12000, scoped, tag = 'internal scratch']
  #allocation2 [shape = 'bf16[32,32]{1,0:T(16,128)(2,1)}', space=vmem, size = 0x2000, scoped, tag = 'scratch operand']
  %s0 = inlined_call_operand.hbm [shape: f32[32,32], index: 0, kind: input, shape index: {}]
  %s1 = inlined_call_operand.hbm [shape: bf16[32,640], index: 1, kind: input, shape index: {}]
  %s2 = inlined_call_operand.hbm [shape: f32[32,32], index: 2, kind: input, shape index: {}]
  %s3 = inlined_call_operand.hbm [shape: f32[32,32], index: 3, kind: input, shape index: {}]
  %s4 = inlined_call_operand.hbm [shape: bf16[32,32], index: 4, kind: input, shape index: {}]
  %s5 = inlined_call_operand.vmem [shape: f32[1,32], index: 5, kind: input, shape index: {}]
  %s6 = inlined_call_operand.hbm [shape: f32[32,32], index: 6, kind: output, shape index: {}]
  %s7 = sld [smem:[#allocation0]]
  $region54: #{tpu_custom_call.1} parent=0
    _
  %s9 = ssub.s32 1, %s7
  %s10 = scalar_select 0, %s9, %s7
  $region1: #{tpu_custom_call.1} parent=0
    #allocation3 [shape = 'u8[16384]{0}', space=vmem, size = 0x4000, scoped, tag = 'input window, operand 0, single buffered']
    #allocation4 [shape = 's32[1]{0}', space=sflag, size = 0x4, scoped, tag = 'scoped memory for tpu_custom_call.1']
    #allocation5 [shape = 's32[1]{0}', space=sflag, size = 0x4, scoped, tag = 'scoped memory for tpu_custom_call.1']
    #allocation6 [shape = 'u8[40960]{0}', space=vmem, size = 0xa000, scoped, tag = 'input window, operand 1, single buffered']
    #allocation7 [shape = 's32[1]{0}', space=sflag, size = 0x4, scoped, tag = 'scoped memory for tpu_custom_call.1']
    #allocation8 [shape = 'u8[16384]{0}', space=vmem, size = 0x4000, scoped, tag = 'input window, operand 2, single buffered']
    #allocation9 [shape = 'u8[16384]{0}', space=vmem, size = 0x4000, scoped, tag = 'input window, operand 3, single buffered']
    #allocation10 [shape = 's32[1]{0}', space=sflag, size = 0x4, scoped, tag = 'scoped memory for tpu_custom_call.1']
    #allocation11 [shape = 'u8[8192]{0}', space=vmem, size = 0x2000, scoped, tag = 'input window, operand 4, single buffered']
    #allocation12 [shape = 'u8[16384]{0}', space=vmem, size = 0x4000, scoped, tag = 'output window, operand 0, single buffered']
    %11 = vsyncpa [#allocation4], 0
    %12 = vsyncpa [#allocation7], 0
    %13 = vsyncpa [#allocation10], 0
    %14 = vsyncpa [#allocation5], 0
    // Predicated region
    $region2: #{tpu_custom_call.1} parent=1 // pred_check
      _
    $region3: #{tpu_custom_call.1} parent=1 // pred_check_branch
      %16 = sbr.rel (0) target = $region5
    $region4: #{tpu_custom_call.1} parent=1 // pred_region
      %s18 = ssub.s32 512, 512
      %19 = vsyncadd [#allocation4], %s18
      %s20 = sshll.u32 [#allocation3], 4
      %s21 = int_to_ptr.vmem [resolvable:$true] %s20
      %26 = dma.hbm_to_vmem [thread:$0]  %s0, 512, %s21, [#allocation4], 128, 128, 8
    $region5: #{tpu_custom_call.1} parent=1 // pred_fallthru
      _
    // Predicated region
    $region6: #{tpu_custom_call.1} parent=1 // pred_check
      _
    $region7: #{tpu_custom_call.1} parent=1 // pred_check_branch
      %28 = sbr.rel (0) target = $region9
    $region8: #{tpu_custom_call.1} parent=1 // pred_region
      %s30 = ssub.s32 1280, 1280
      %31 = vsyncadd [#allocation7], %s30
      %s32 = sshll.u32 [#allocation6], 4
      %s33 = int_to_ptr.vmem [resolvable:$true] %s32
      %38 = dma.hbm_to_vmem [thread:$0]  %s1, 1280, %s33, [#allocation7], 320, 320, 20
    $region9: #{tpu_custom_call.1} parent=1 // pred_fallthru
      _
    // Predicated region
    $region10: #{tpu_custom_call.1} parent=1 // pred_check
      _
    $region11: #{tpu_custom_call.1} parent=1 // pred_check_branch
      %40 = sbr.rel (0) target = $region13
    $region12: #{tpu_custom_call.1} parent=1 // pred_region
      %s42 = ssub.s32 512, 512
      %43 = vsyncadd [#allocation7], %s42
      %s44 = sshll.u32 [#allocation8], 4
      %s45 = int_to_ptr.vmem [resolvable:$true] %s44
      %50 = dma.hbm_to_vmem [thread:$0]  %s2, 512, %s45, [#allocation7], 128, 128, 8
    $region13: #{tpu_custom_call.1} parent=1 // pred_fallthru
      _
    // Predicated region
    $region14: #{tpu_custom_call.1} parent=1 // pred_check
      _
    $region15: #{tpu_custom_call.1} parent=1 // pred_check_branch
      %52 = sbr.rel (0) target = $region17
    $region16: #{tpu_custom_call.1} parent=1 // pred_region
      %s54 = ssub.s32 512, 512
      %55 = vsyncadd [#allocation10], %s54
      %s56 = sshll.u32 [#allocation9], 4
      %s57 = int_to_ptr.vmem [resolvable:$true] %s56
      %62 = dma.hbm_to_vmem [thread:$0]  %s3, 512, %s57, [#allocation10], 128, 128, 8
    $region17: #{tpu_custom_call.1} parent=1 // pred_fallthru
      _
    // Predicated region
    $region18: #{tpu_custom_call.1} parent=1 // pred_check
      _
    $region19: #{tpu_custom_call.1} parent=1 // pred_check_branch
      %64 = sbr.rel (0) target = $region21
    $region20: #{tpu_custom_call.1} parent=1 // pred_region
      %s66 = ssub.s32 256, 256
      %67 = vsyncadd [#allocation10], %s66
      %s68 = sshll.u32 [#allocation11], 4
      %s69 = int_to_ptr.vmem [resolvable:$true] %s68
      %74 = dma.hbm_to_vmem [thread:$0]  %s4, 256, %s69, [#allocation10], 64, 64, 4
    $region21: #{tpu_custom_call.1} parent=1 // pred_fallthru
      _
    // Predicated region
    $region22: #{tpu_custom_call.1} parent=1 // pred_check
      _
    $region23: #{tpu_custom_call.1} parent=1 // pred_check_branch
      %76 = sbr.rel (0) target = $region25
    $region24: #{tpu_custom_call.1} parent=1 // pred_region
      _
    $region25: #{tpu_custom_call.1} parent=1 // pred_fallthru
      _
    // Predicated region
    $region26: #{tpu_custom_call.1} parent=1 // pred_check
      _
    $region27: #{tpu_custom_call.1} parent=1 // pred_check_branch
      %78 = sbr.rel (0) target = $region29
    $region28: #{tpu_custom_call.1} parent=1 // pred_region
      %79 = dma.done [#allocation4], 512
    $region29: #{tpu_custom_call.1} parent=1 // pred_fallthru
      _
    // Predicated region
    $region30: #{tpu_custom_call.1} parent=1 // pred_check
      _
    $region31: #{tpu_custom_call.1} parent=1 // pred_check_branch
      %81 = sbr.rel (0) target = $region33
    $region32: #{tpu_custom_call.1} parent=1 // pred_region
      %82 = dma.done [#allocation7], 1280
    $region33: #{tpu_custom_call.1} parent=1 // pred_fallthru
      _
    // Predicated region
    $region34: #{tpu_custom_call.1} parent=1 // pred_check
      _
    $region35: #{tpu_custom_call.1} parent=1 // pred_check_branch
      %84 = sbr.rel (0) target = $region37
    $region36: #{tpu_custom_call.1} parent=1 // pred_region
      %85 = dma.done [#allocation7], 512
    $region37: #{tpu_custom_call.1} parent=1 // pred_fallthru
      _
    // Predicated region
    $region38: #{tpu_custom_call.1} parent=1 // pred_check
      _
    $region39: #{tpu_custom_call.1} parent=1 // pred_check_branch
      %87 = sbr.rel (0) target = $region41
    $region40: #{tpu_custom_call.1} parent=1 // pred_region
      %88 = dma.done [#allocation10], 512
    $region41: #{tpu_custom_call.1} parent=1 // pred_fallthru
      _
    // Predicated region
    $region42: #{tpu_custom_call.1} parent=1 // pred_check
      _
    $region43: #{tpu_custom_call.1} parent=1 // pred_check_branch
      %90 = sbr.rel (0) target = $region45
    $region44: #{tpu_custom_call.1} parent=1 // pred_region
      %91 = dma.done [#allocation10], 256
    $region45: #{tpu_custom_call.1} parent=1 // pred_fallthru
      _
    %v93 = vld [vmem:[#allocation3] sm:$0xff]
    %v94 = vld [vmem:[#allocation3 + $0x8] sm:$0xff]
    %v95 = vld [vmem:[#allocation3 + $0x10] sm:$0xff]
    %v96 = vld [vmem:[#allocation3 + $0x18] sm:$0xff]
    %v97 = vpack.c.bf16 %v94, %v93
    %v98 = vpack.c.bf16 %v96, %v95
    %v99 = vld [vmem:[#allocation6] sm:$0xff]
    %v100 = vld [vmem:[#allocation6 + $0x8] sm:$0xff]
    %v101 = vld [vmem:[#allocation6 + $0x10] sm:$0xf]
    %v102 = vld [vmem:[#allocation6 + $0x14] sm:$0xff]
    %v103 = vld [vmem:[#allocation6 + $0x1c] sm:$0xff]
    %v104 = vld [vmem:[#allocation6 + $0x24] sm:$0xf]
    %v105 = vld [vmem:[#allocation6 + $0x28] sm:$0xff]
    %v106 = vld [vmem:[#allocation6 + $0x30] sm:$0xff]
    %v107 = vld [vmem:[#allocation6 + $0x38] sm:$0xf]
    %v108 = vld [vmem:[#allocation6 + $0x3c] sm:$0xff]
    %v109 = vld [vmem:[#allocation6 + $0x44] sm:$0xff]
    %v110 = vld [vmem:[#allocation6 + $0x4c] sm:$0xf]
    %v123 = vunpack.c.l.b16 %v99
    %v124 = vunpack.c.h.b16 %v99
    %v125 = vunpack.c.l.b16 %v100
    %v126 = vunpack.c.h.b16 %v100
    %v127 = vunpack.c.l.b16 %v101
    %v128 = vunpack.c.l.b16 %v102
    %v129 = vunpack.c.h.b16 %v102
    %v130 = vunpack.c.l.b16 %v103
    %v131 = vunpack.c.h.b16 %v103
    %v132 = vunpack.c.l.b16 %v104
    %v133 = vunpack.c.l.b16 %v105
    %v134 = vunpack.c.h.b16 %v105
    %v135 = vunpack.c.l.b16 %v106
    %v136 = vunpack.c.h.b16 %v106
    %v137 = vunpack.c.l.b16 %v107
    %v138 = vunpack.c.l.b16 %v108
    %v139 = vunpack.c.h.b16 %v108
    %v140 = vunpack.c.l.b16 %v109
    %v141 = vunpack.c.h.b16 %v109
    %v142 = vunpack.c.l.b16 %v110
    %v143 = vpack.c.b16 %v128, %v123
    %v144 = vpack.c.b16 %v129, %v124
    %v145 = vpack.c.b16 %v130, %v125
    %v146 = vpack.c.b16 %v131, %v126
    %v147 = vpack.c.b16 %v132, %v127
    %v148 = vpack.c.b16 %v138, %v133
    %v149 = vpack.c.b16 %v139, %v134
    %v150 = vpack.c.b16 %v140, %v135
    %v151 = vpack.c.b16 %v141, %v136
    %v152 = vpack.c.b16 %v142, %v137
    %vm163 = vcmask 261120
    %v165 = vsel %vm163, %v97, 0
    %v168 = vsel %vm163, %v98, 0
    %170 = vmatprep.subr.bf16.mxu0 %v144
    %171 = vmatpush1.bf16.msra.mxu0 %v143
    %172 = vmatprep.subr.bf16.mxu0 %v149
    %173 = vmatpush1.bf16.msra.mxu0 %v148
    %174 = vmatprep.subr.bf16.mxu0 0
    %175 = vmatpush1.bf16.msra.mxu0 0
    %176 = vmatprep.subr.bf16.mxu0 0
    %177 = vmatpush1.bf16.msra.mxu0 0
    %178 = vmatprep.subr.bf16.mxu0 0
    %179 = vmatpush1.bf16.msra.mxu0 0
    %180 = vmatprep.subr.bf16.mxu0 0
    %181 = vmatpush1.bf16.msra.mxu0 0
    %182 = vmatprep.subr.bf16.mxu0 0
    %183 = vmatpush1.bf16.msra.mxu0 0
    %184 = vmatprep.subr.bf16.mxu0 0
    %185 = vmatpush1.bf16.msra.mxu0 0
    %186 = vmatprep.subr.bf16.mxu0 0
    %187 = vmatpush1.bf16.msra.mxu0 0
    %188 = vmatprep.subr.bf16.mxu0 0
    %189 = vmatpush1.bf16.msra.mxu0 0
    %190 = vmatprep.subr.bf16.mxu0 0
    %191 = vmatpush1.bf16.msra.mxu0 0
    %192 = vmatprep.subr.bf16.mxu0 0
    %193 = vmatpush1.bf16.msra.mxu0 0
    %194 = vmatprep.subr.bf16.mxu0 0
    %195 = vmatpush1.bf16.msra.mxu0 0
    %196 = vmatprep.subr.bf16.mxu0 0
    %197 = vmatpush1.bf16.msra.mxu0 0
    %198 = vmatprep.subr.bf16.mxu0 0
    %199 = vmatpush1.bf16.msra.mxu0 0
    %200 = vmatprep.subr.bf16.mxu0 0
    %201 = vmatpush1.bf16.msra.mxu0 0
    %202 = vmatprep.mubr.bf16.mxu0 0
    %203 = vmatmul.mubr.bf16.gmra.mrb[0].mxu0 %v165
    %v204 = vpop.f32.mrb[0].mxu0
    %v205 = vadd.f32 0.0, %v204
    %v206 = vpop.f32.mrb[0].mxu0
    %v207 = vadd.f32 0.0, %v206
    %v208 = vpop.f32.mrb[0].mxu0
    %v209 = vadd.f32 0.0, %v208
    %v210 = vpop.f32.mrb[0].mxu0
    %v211 = vadd.f32 0.0, %v210
    %212 = vmatprep.mubr.bf16.mxu0 0
    %213 = vmatmul.mubr.bf16.gmra.mrb[0].mxu0 %v168
    %v214 = vpop.f32.mrb[0].mxu0
    %v215 = vadd.f32 0.0, %v214
    %v216 = vpop.f32.mrb[0].mxu0
    %v217 = vadd.f32 0.0, %v216
    %v218 = vpop.f32.mrb[0].mxu0
    %v219 = vadd.f32 0.0, %v218
    %v220 = vpop.f32.mrb[0].mxu0
    %v221 = vadd.f32 0.0, %v220
    %222 = vdwg.mxu0
    %223 = vmatprep.subr.bf16.mxu0 %v146
    %224 = vmatpush1.bf16.msra.mxu0 %v145
    %225 = vmatprep.subr.bf16.mxu0 %v151
    %226 = vmatpush1.bf16.msra.mxu0 %v150
    %227 = vmatprep.subr.bf16.mxu0 0
    %228 = vmatpush1.bf16.msra.mxu0 0
    %229 = vmatprep.subr.bf16.mxu0 0
    %230 = vmatpush1.bf16.msra.mxu0 0
    %231 = vmatprep.subr.bf16.mxu0 0
    %232 = vmatpush1.bf16.msra.mxu0 0
    %233 = vmatprep.subr.bf16.mxu0 0
    %234 = vmatpush1.bf16.msra.mxu0 0
    %235 = vmatprep.subr.bf16.mxu0 0
    %236 = vmatpush1.bf16.msra.mxu0 0
    %237 = vmatprep.subr.bf16.mxu0 0
    %238 = vmatpush1.bf16.msra.mxu0 0
    %239 = vmatprep.subr.bf16.mxu0 0
    %240 = vmatpush1.bf16.msra.mxu0 0
    %241 = vmatprep.subr.bf16.mxu0 0
    %242 = vmatpush1.bf16.msra.mxu0 0
    %243 = vmatprep.subr.bf16.mxu0 0
    %244 = vmatpush1.bf16.msra.mxu0 0
    %245 = vmatprep.subr.bf16.mxu0 0
    %246 = vmatpush1.bf16.msra.mxu0 0
    %247 = vmatprep.subr.bf16.mxu0 0
    %248 = vmatpush1.bf16.msra.mxu0 0
    %249 = vmatprep.subr.bf16.mxu0 0
    %250 = vmatpush1.bf16.msra.mxu0 0
    %251 = vmatprep.subr.bf16.mxu0 0
    %252 = vmatpush1.bf16.msra.mxu0 0
    %253 = vmatprep.subr.bf16.mxu0 0
    %254 = vmatpush1.bf16.msra.mxu0 0
    %255 = vmatprep.mubr.bf16.mxu0 0
    %256 = vmatmul.mubr.bf16.gmra.mrb[0].mxu0 %v165
    %v257 = vpop.f32.mrb[0].mxu0
    %v258 = vadd.f32 0.0, %v257
    %v259 = vpop.f32.mrb[0].mxu0
    %v260 = vadd.f32 0.0, %v259
    %v261 = vpop.f32.mrb[0].mxu0
    %v262 = vadd.f32 0.0, %v261
    %v263 = vpop.f32.mrb[0].mxu0
    %v264 = vadd.f32 0.0, %v263
    %265 = vmatprep.mubr.bf16.mxu0 0
    %266 = vmatmul.mubr.bf16.gmra.mrb[0].mxu0 %v168
    %v267 = vpop.f32.mrb[0].mxu0
    %v268 = vadd.f32 0.0, %v267
    %v269 = vpop.f32.mrb[0].mxu0
    %v270 = vadd.f32 0.0, %v269
    %v271 = vpop.f32.mrb[0].mxu0
    %v272 = vadd.f32 0.0, %v271
    %v273 = vpop.f32.mrb[0].mxu0
    %v274 = vadd.f32 0.0, %v273
    %275 = vdwg.mxu0
    %276 = vmatprep.subr.bf16.mxu0 0
    %277 = vmatpush1.bf16.msra.mxu0 %v147
    %278 = vmatprep.subr.bf16.mxu0 0
    %279 = vmatpush1.bf16.msra.mxu0 %v152
    %280 = vmatprep.subr.bf16.mxu0 0
    %281 = vmatpush1.bf16.msra.mxu0 0
    %282 = vmatprep.subr.bf16.mxu0 0
    %283 = vmatpush1.bf16.msra.mxu0 0
    %284 = vmatprep.subr.bf16.mxu0 0
    %285 = vmatpush1.bf16.msra.mxu0 0
    %286 = vmatprep.subr.bf16.mxu0 0
    %287 = vmatpush1.bf16.msra.mxu0 0
    %288 = vmatprep.subr.bf16.mxu0 0
    %289 = vmatpush1.bf16.msra.mxu0 0
    %290 = vmatprep.subr.bf16.mxu0 0
    %291 = vmatpush1.bf16.msra.mxu0 0
    %292 = vmatprep.subr.bf16.mxu0 0
    %293 = vmatpush1.bf16.msra.mxu0 0
    %294 = vmatprep.subr.bf16.mxu0 0
    %295 = vmatpush1.bf16.msra.mxu0 0
    %296 = vmatprep.subr.bf16.mxu0 0
    %297 = vmatpush1.bf16.msra.mxu0 0
    %298 = vmatprep.subr.bf16.mxu0 0
    %299 = vmatpush1.bf16.msra.mxu0 0
    %300 = vmatprep.subr.bf16.mxu0 0
    %301 = vmatpush1.bf16.msra.mxu0 0
    %302 = vmatprep.subr.bf16.mxu0 0
    %303 = vmatpush1.bf16.msra.mxu0 0
    %304 = vmatprep.subr.bf16.mxu0 0
    %305 = vmatpush1.bf16.msra.mxu0 0
    %306 = vmatprep.subr.bf16.mxu0 0
    %307 = vmatpush1.bf16.msra.mxu0 0
    %308 = vmatprep.mubr.bf16.mxu0 0
    %309 = vmatmul.mubr.bf16.gmra.mrb[0].mxu0 %v165
    %v310 = vpop.f32.mrb[0].mxu0
    %v311 = vadd.f32 0.0, %v310
    %v312 = vpop.f32.mrb[0].mxu0
    %v313 = vpop.f32.mrb[0].mxu0
    %v314 = vadd.f32 0.0, %v313
    %v315 = vpop.f32.mrb[0].mxu0
    %316 = vmatprep.mubr.bf16.mxu0 0
    %317 = vmatmul.mubr.bf16.gmra.mrb[0].mxu0 %v168
    %v318 = vpop.f32.mrb[0].mxu0
    %v319 = vadd.f32 0.0, %v318
    %v320 = vpop.f32.mrb[0].mxu0
    %v321 = vpop.f32.mrb[0].mxu0
    %v322 = vadd.f32 0.0, %v321
    %v323 = vpop.f32.mrb[0].mxu0
    %324 = vdwg.mxu0
    %v325 = vld [vmem:[#allocation8] sm:$0xff]
    %v326 = vld [vmem:[#allocation8 + $0x8] sm:$0xff]
    %v327 = vld [vmem:[#allocation8 + $0x10] sm:$0xff]
    %v328 = vld [vmem:[#allocation8 + $0x18] sm:$0xff]
    %v329 = vld [vmem:[#allocation9] sm:$0xff]
    %v330 = vld [vmem:[#allocation9 + $0x8] sm:$0xff]
    %v331 = vld [vmem:[#allocation9 + $0x10] sm:$0xff]
    %v332 = vld [vmem:[#allocation9 + $0x18] sm:$0xff]
    %v333 = vmul.f32 %v205, %v325
    %v334 = vmul.f32 %v209, %v326
    %v335 = vmul.f32 %v215, %v327
    %v336 = vmul.f32 %v219, %v328
    %v337 = vmul.f32 %v260, %v329
    %v338 = vmul.f32 %v264, %v330
    %v339 = vmul.f32 %v270, %v331
    %v340 = vmul.f32 %v274, %v332
    %v341 = vadd.f32 %v333, %v337
    %v342 = vadd.f32 %v334, %v338
    %v343 = vadd.f32 %v335, %v339
    %v344 = vadd.f32 %v336, %v340
    %v345 = vmul.f32 %v207, %v325
    %v346 = vmul.f32 %v211, %v326
    %v347 = vmul.f32 %v217, %v327
    %v348 = vmul.f32 %v221, %v328
    %v349 = vmul.f32 %v311, %v329
    %v350 = vmul.f32 %v314, %v330
    %v351 = vmul.f32 %v319, %v331
    %v352 = vmul.f32 %v322, %v332
    %v353 = vadd.f32 %v345, %v349
    %v354 = vadd.f32 %v346, %v350
    %v355 = vadd.f32 %v347, %v351
    %v356 = vadd.f32 %v348, %v352
    %v357 = vpack.c.bf16 %v342, %v341
    %v358 = vpack.c.bf16 %v344, %v343
    %v359 = vpack.c.bf16 %v262, %v258
    %v360 = vpack.c.bf16 %v272, %v268
    %361 = vxpose.xlu0.b32.start [1/16] %v353, 128
    %362 = vxpose.xlu0.b32.cont [2/16] %v354, 128
    %363 = vxpose.xlu0.b32.cont [3/16] 0.0, 128
    %364 = vxpose.xlu0.b32.cont [4/16] 0.0, 128
    %365 = vxpose.xlu0.b32.cont [5/16] 0.0, 128
    %366 = vxpose.xlu0.b32.cont [6/16] 0.0, 128
    %367 = vxpose.xlu0.b32.cont [7/16] 0.0, 128
    %368 = vxpose.xlu0.b32.cont [8/16] 0.0, 128
    %369 = vxpose.xlu0.b32.cont [9/16] 0.0, 128
    %370 = vxpose.xlu0.b32.cont [10/16] 0.0, 128
    %371 = vxpose.xlu0.b32.cont [11/16] 0.0, 128
    %372 = vxpose.xlu0.b32.cont [12/16] 0.0, 128
    %373 = vxpose.xlu0.b32.cont [13/16] 0.0, 128
    %374 = vxpose.xlu0.b32.cont [14/16] 0.0, 128
    %375 = vxpose.xlu0.b32.cont [15/16] 0.0, 128
    %376 = vxpose.xlu0.b32.end [16/16] 0.0, 128
    %v377 = vpop.trf.xlu0
    %v378 = vpop.trf.xlu0
    %v379 = vpop.trf.xlu0
    %v380 = vpop.trf.xlu0
    %v381 = vpop.trf.xlu0
    %v382 = vpop.trf.xlu0
    %v383 = vpop.trf.xlu0
    %v384 = vpop.trf.xlu0
    %v385 = vpop.trf.xlu0
    %v386 = vpop.trf.xlu0
    %v387 = vpop.trf.xlu0
    %v388 = vpop.trf.xlu0
    %v389 = vpop.trf.xlu0
    %v390 = vpop.trf.xlu0
    %v391 = vpop.trf.xlu0
    %v392 = vpop.trf.xlu0
    %v393 = vpack.c.bf16 %v377, %v377
    %vm394 = vcmask 64512
    %v396 = vsel %vm394, %v357, 0
    %vm398 = vcmask 1043456
    %v400 = vsel %vm398, %v393, 0
    %402 = vmatprep.subr.bf16.mxu0 0
    %403 = vmatpush1.bf16.msra.mxu0 %v400
    %404 = vmatprep.subr.bf16.mxu0 0
    %405 = vmatpush1.bf16.msra.mxu0 0
    %406 = vmatprep.subr.bf16.mxu0 0
    %407 = vmatpush1.bf16.msra.mxu0 0
    %408 = vmatprep.subr.bf16.mxu0 0
    %409 = vmatpush1.bf16.msra.mxu0 0
    %410 = vmatprep.subr.bf16.mxu0 0
    %411 = vmatpush1.bf16.msra.mxu0 0
    %412 = vmatprep.subr.bf16.mxu0 0
    %413 = vmatpush1.bf16.msra.mxu0 0
    %414 = vmatprep.subr.bf16.mxu0 0
    %415 = vmatpush1.bf16.msra.mxu0 0
    %416 = vmatprep.subr.bf16.mxu0 0
    %417 = vmatpush1.bf16.msra.mxu0 0
    %418 = vmatprep.subr.bf16.mxu0 0
    %419 = vmatpush1.bf16.msra.mxu0 0
    %420 = vmatprep.subr.bf16.mxu0 0
    %421 = vmatpush1.bf16.msra.mxu0 0
    %422 = vmatprep.subr.bf16.mxu0 0
    %423 = vmatpush1.bf16.msra.mxu0 0
    %424 = vmatprep.subr.bf16.mxu0 0
    %425 = vmatpush1.bf16.msra.mxu0 0
    %426 = vmatprep.subr.bf16.mxu0 0
    %427 = vmatpush1.bf16.msra.mxu0 0
    %428 = vmatprep.subr.bf16.mxu0 0
    %429 = vmatpush1.bf16.msra.mxu0 0
    %430 = vmatprep.subr.bf16.mxu0 0
    %431 = vmatpush1.bf16.msra.mxu0 0
    %432 = vmatprep.subr.bf16.mxu0 0
    %433 = vmatpush1.bf16.msra.mxu0 0
    %434 = vmatprep.mubr.bf16.mxu0 0
    %435 = vmatmul.mubr.bf16.gmra.mrb[0].mxu0 %v396
    %v436 = vpop.f32.mrb[0].mxu0
    %v437 = vadd.f32 0.0, %v436
    %v438 = vpop.f32.mrb[0].mxu0
    %v439 = vpop.f32.mrb[0].mxu0
    %v440 = vadd.f32 0.0, %v439
    %v441 = vpop.f32.mrb[0].mxu0
    %442 = vdwg.mxu0
    %vm443 = vcmask 130048
    %v444 = vsel %vm443, %v437, -inf
    %445 = vmax.xlane.f32.xlu0 %v444
    %v446 = vpop.xlane.xlu0 %445
    %v447 = vsel %vm443, %v440, -inf
    %448 = vmax.xlane.f32.xlu0 %v447
    %v449 = vpop.xlane.xlu0 %448
    %v450 = vsub.f32 %v437, %v446
    %v451 = vsub.f32 %v440, %v449
    %v452 = vmul.f32 %v450, 1.442695
    %v453 = vpow.pop %v452
    %v454 = vmul.f32 %v451, 1.442695
    %v455 = vpow.pop %v454
    %v456 = vsel %vm443, %v453, 0.0
    %457 = vadd.xlane.f32.xlu0 %v456
    %v458 = vpop.xlane.xlu0 %457
    %v459 = vsel %vm443, %v455, 0.0
    %460 = vadd.xlane.f32.xlu0 %v459
    %v461 = vpop.xlane.xlu0 %460
    %v462 = vpack.c.bf16 %v455, %v453
    %v464 = vsel %vm443, %v462, 0
    %466 = vmatprep.subr.bf16.mxu0 0
    %467 = vmatpush1.bf16.msra.mxu0 %v359
    %468 = vmatprep.subr.bf16.mxu0 0
    %469 = vmatpush1.bf16.msra.mxu0 0
    %470 = vmatprep.subr.bf16.mxu0 0
    %471 = vmatpush1.bf16.msra.mxu0 0
    %472 = vmatprep.subr.bf16.mxu0 0
    %473 = vmatpush1.bf16.msra.mxu0 0
    %474 = vmatprep.subr.bf16.mxu0 0
    %475 = vmatpush1.bf16.msra.mxu0 0
    %476 = vmatprep.subr.bf16.mxu0 0
    %477 = vmatpush1.bf16.msra.mxu0 0
    %478 = vmatprep.subr.bf16.mxu0 0
    %479 = vmatpush1.bf16.msra.mxu0 0
    %480 = vmatprep.subr.bf16.mxu0 0
    %481 = vmatpush1.bf16.msra.mxu0 0
    %482 = vmatprep.subr.bf16.mxu0 0
    %483 = vmatpush1.bf16.msra.mxu0 0
    %484 = vmatprep.subr.bf16.mxu0 0
    %485 = vmatpush1.bf16.msra.mxu0 0
    %486 = vmatprep.subr.bf16.mxu0 0
    %487 = vmatpush1.bf16.msra.mxu0 0
    %488 = vmatprep.subr.bf16.mxu0 0
    %489 = vmatpush1.bf16.msra.mxu0 0
    %490 = vmatprep.subr.bf16.mxu0 0
    %491 = vmatpush1.bf16.msra.mxu0 0
    %492 = vmatprep.subr.bf16.mxu0 0
    %493 = vmatpush1.bf16.msra.mxu0 0
    %494 = vmatprep.subr.bf16.mxu0 0
    %495 = vmatpush1.bf16.msra.mxu0 0
    %496 = vmatprep.subr.bf16.mxu0 0
    %497 = vmatpush1.bf16.msra.mxu0 0
    %498 = vmatprep.mubr.bf16.mxu0 0
    %499 = vmatmul.mubr.bf16.gmra.mrb[0].mxu0 %v464
    %v500 = vpop.f32.mrb[0].mxu0
    %v501 = vadd.f32 0.0, %v500
    %v502 = vpop.f32.mrb[0].mxu0
    %v503 = vpop.f32.mrb[0].mxu0
    %v504 = vadd.f32 0.0, %v503
    %v505 = vpop.f32.mrb[0].mxu0
    %506 = vdwg.mxu0
    %v507 = vrcp.pop %v458
    %v508 = vrcp.pop %v461
    %v509 = vmul.f32 %v501, %v507
    %v510 = vmul.f32 %v504, %v508
    %v511 = vpack.c.bf16 %v510, %v509
    %512 = vst.msk [vmem:[#allocation2] sm:$0xff] %vm394, %v511
    %v513 = vpack.c.bf16 %v378, %v378
    %515 = vrot.lane.b32.xlu0 %v357, 120
    %v516 = vpop.permute.xlu0 %515
    %v518 = vsel %vm394, %v516, 0
    %v521 = vsel %vm398, %v513, 0
    %523 = vmatprep.subr.bf16.mxu0 0
    %524 = vmatpush1.bf16.msra.mxu0 %v521
    %525 = vmatprep.subr.bf16.mxu0 0
    %526 = vmatpush1.bf16.msra.mxu0 0
    %527 = vmatprep.subr.bf16.mxu0 0
    %528 = vmatpush1.bf16.msra.mxu0 0
    %529 = vmatprep.subr.bf16.mxu0 0
    %530 = vmatpush1.bf16.msra.mxu0 0
    %531 = vmatprep.subr.bf16.mxu0 0
    %532 = vmatpush1.bf16.msra.mxu0 0
    %533 = vmatprep.subr.bf16.mxu0 0
    %534 = vmatpush1.bf16.msra.mxu0 0
    %535 = vmatprep.subr.bf16.mxu0 0
    %536 = vmatpush1.bf16.msra.mxu0 0
    %537 = vmatprep.subr.bf16.mxu0 0
    %538 = vmatpush1.bf16.msra.mxu0 0
    %539 = vmatprep.subr.bf16.mxu0 0
    %540 = vmatpush1.bf16.msra.mxu0 0
    %541 = vmatprep.subr.bf16.mxu0 0
    %542 = vmatpush1.bf16.msra.mxu0 0
    %543 = vmatprep.subr.bf16.mxu0 0
    %544 = vmatpush1.bf16.msra.mxu0 0
    %545 = vmatprep.subr.bf16.mxu0 0
    %546 = vmatpush1.bf16.msra.mxu0 0
    %547 = vmatprep.subr.bf16.mxu0 0
    %548 = vmatpush1.bf16.msra.mxu0 0
    %549 = vmatprep.subr.bf16.mxu0 0
    %550 = vmatpush1.bf16.msra.mxu0 0
    %551 = vmatprep.subr.bf16.mxu0 0
    %552 = vmatpush1.bf16.msra.mxu0 0
    %553 = vmatprep.subr.bf16.mxu0 0
    %554 = vmatpush1.bf16.msra.mxu0 0
    %555 = vmatprep.mubr.bf16.mxu0 0
    %556 = vmatmul.mubr.bf16.gmra.mrb[0].mxu0 %v518
    %v557 = vpop.f32.mrb[0].mxu0
    %v558 = vadd.f32 0.0, %v557
    %v559 = vpop.f32.mrb[0].mxu0
    %v560 = vpop.f32.mrb[0].mxu0
    %v561 = vadd.f32 0.0, %v560
    %v562 = vpop.f32.mrb[0].mxu0
    %563 = vdwg.mxu0
    %v564 = vsel %vm443, %v558, -inf
    %565 = vmax.xlane.f32.xlu0 %v564
    %v566 = vpop.xlane.xlu0 %565
    %v567 = vsel %vm443, %v561, -inf
    %568 = vmax.xlane.f32.xlu0 %v567
    %v569 = vpop.xlane.xlu0 %568
    %v570 = vsub.f32 %v558, %v566
    %v571 = vsub.f32 %v561, %v569
    %v572 = vmul.f32 %v570, 1.442695
    %v573 = vpow.pop %v572
    %v574 = vmul.f32 %v571, 1.442695
    %v575 = vpow.pop %v574
    %v576 = vsel %vm443, %v573, 0.0
    %577 = vadd.xlane.f32.xlu0 %v576
    %v578 = vpop.xlane.xlu0 %577
    %v579 = vsel %vm443, %v575, 0.0
    %580 = vadd.xlane.f32.xlu0 %v579
    %v581 = vpop.xlane.xlu0 %580
    %v582 = vpack.c.bf16 %v575, %v573
    %584 = vrot.lane.b32.xlu0 %v359, 120
    %v585 = vpop.permute.xlu0 %584
    %v588 = vsel %vm443, %v582, 0
    %590 = vmatprep.subr.bf16.mxu0 0
    %591 = vmatpush1.bf16.msra.mxu0 %v585
    %592 = vmatprep.subr.bf16.mxu0 0
    %593 = vmatpush1.bf16.msra.mxu0 0
    %594 = vmatprep.subr.bf16.mxu0 0
    %595 = vmatpush1.bf16.msra.mxu0 0
    %596 = vmatprep.subr.bf16.mxu0 0
    %597 = vmatpush1.bf16.msra.mxu0 0
    %598 = vmatprep.subr.bf16.mxu0 0
    %599 = vmatpush1.bf16.msra.mxu0 0
    %600 = vmatprep.subr.bf16.mxu0 0
    %601 = vmatpush1.bf16.msra.mxu0 0
    %602 = vmatprep.subr.bf16.mxu0 0
    %603 = vmatpush1.bf16.msra.mxu0 0
    %604 = vmatprep.subr.bf16.mxu0 0
    %605 = vmatpush1.bf16.msra.mxu0 0
    %606 = vmatprep.subr.bf16.mxu0 0
    %607 = vmatpush1.bf16.msra.mxu0 0
    %608 = vmatprep.subr.bf16.mxu0 0
    %609 = vmatpush1.bf16.msra.mxu0 0
    %610 = vmatprep.subr.bf16.mxu0 0
    %611 = vmatpush1.bf16.msra.mxu0 0
    %612 = vmatprep.subr.bf16.mxu0 0
    %613 = vmatpush1.bf16.msra.mxu0 0
    %614 = vmatprep.subr.bf16.mxu0 0
    %615 = vmatpush1.bf16.msra.mxu0 0
    %616 = vmatprep.subr.bf16.mxu0 0
    %617 = vmatpush1.bf16.msra.mxu0 0
    %618 = vmatprep.subr.bf16.mxu0 0
    %619 = vmatpush1.bf16.msra.mxu0 0
    %620 = vmatprep.subr.bf16.mxu0 0
    %621 = vmatpush1.bf16.msra.mxu0 0
    %622 = vmatprep.mubr.bf16.mxu0 0
    %623 = vmatmul.mubr.bf16.gmra.mrb[0].mxu0 %v588
    %v624 = vpop.f32.mrb[0].mxu0
    %v625 = vadd.f32 0.0, %v624
    %v626 = vpop.f32.mrb[0].mxu0
    %v627 = vpop.f32.mrb[0].mxu0
    %v628 = vadd.f32 0.0, %v627
    %v629 = vpop.f32.mrb[0].mxu0
    %630 = vdwg.mxu0
    %v631 = vrcp.pop %v578
    %v632 = vrcp.pop %v581
    %v633 = vmul.f32 %v625, %v631
    %v634 = vmul.f32 %v628, %v632
    %v635 = vpack.c.bf16 %v634, %v633
    %637 = vrot.lane.b32.xlu0 %v635, 8
    %v638 = vpop.permute.xlu0 %637
    %vm640 = vcmask 130112
    %641 = vst.msk [vmem:[#allocation2] sm:$0xff] %vm640, %v638
    %v642 = vpack.c.bf16 %v379, %v379
    %643 = vrot.lane.b32.xlu0 %v357, 112
    %v644 = vpop.permute.xlu0 %643
    %v646 = vsel %vm394, %v644, 0
    %v649 = vsel %vm398, %v642, 0
    %651 = vmatprep.subr.bf16.mxu0 0
    %652 = vmatpush1.bf16.msra.mxu0 %v649
    %653 = vmatprep.subr.bf16.mxu0 0
    %654 = vmatpush1.bf16.msra.mxu0 0
    %655 = vmatprep.subr.bf16.mxu0 0
    %656 = vmatpush1.bf16.msra.mxu0 0
    %657 = vmatprep.subr.bf16.mxu0 0
    %658 = vmatpush1.bf16.msra.mxu0 0
    %659 = vmatprep.subr.bf16.mxu0 0
    %660 = vmatpush1.bf16.msra.mxu0 0
    %661 = vmatprep.subr.bf16.mxu0 0
    %662 = vmatpush1.bf16.msra.mxu0 0
    %663 = vmatprep.subr.bf16.mxu0 0
    %664 = vmatpush1.bf16.msra.mxu0 0
    %665 = vmatprep.subr.bf16.mxu0 0
    %666 = vmatpush1.bf16.msra.mxu0 0
    %667 = vmatprep.subr.bf16.mxu0 0
    %668 = vmatpush1.bf16.msra.mxu0 0
    %669 = vmatprep.subr.bf16.mxu0 0
    %670 = vmatpush1.bf16.msra.mxu0 0
    %671 = vmatprep.subr.bf16.mxu0 0
    %672 = vmatpush1.bf16.msra.mxu0 0
    %673 = vmatprep.subr.bf16.mxu0 0
    %674 = vmatpush1.bf16.msra.mxu0 0
    %675 = vmatprep.subr.bf16.mxu0 0
    %676 = vmatpush1.bf16.msra.mxu0 0
    %677 = vmatprep.subr.bf16.mxu0 0
    %678 = vmatpush1.bf16.msra.mxu0 0
    %679 = vmatprep.subr.bf16.mxu0 0
    %680 = vmatpush1.bf16.msra.mxu0 0
    %681 = vmatprep.subr.bf16.mxu0 0
    %682 = vmatpush1.bf16.msra.mxu0 0
    %683 = vmatprep.mubr.bf16.mxu0 0
    %684 = vmatmul.mubr.bf16.gmra.mrb[0].mxu0 %v646
    %v685 = vpop.f32.mrb[0].mxu0
    %v686 = vadd.f32 0.0, %v685
    %v687 = vpop.f32.mrb[0].mxu0
    %v688 = vpop.f32.mrb[0].mxu0
    %v689 = vadd.f32 0.0, %v688
    %v690 = vpop.f32.mrb[0].mxu0
    %691 = vdwg.mxu0
    %v692 = vsel %vm443, %v686, -inf
    %693 = vmax.xlane.f32.xlu0 %v692
    %v694 = vpop.xlane.xlu0 %693
    %v695 = vsel %vm443, %v689, -inf
    %696 = vmax.xlane.f32.xlu0 %v695
    %v697 = vpop.xlane.xlu0 %696
    %v698 = vsub.f32 %v686, %v694
    %v699 = vsub.f32 %v689, %v697
    %v700 = vmul.f32 %v698, 1.442695
    %v701 = vpow.pop %v700
    %v702 = vmul.f32 %v699, 1.442695
    %v703 = vpow.pop %v702
    %v704 = vsel %vm443, %v701, 0.0
    %705 = vadd.xlane.f32.xlu0 %v704
    %v706 = vpop.xlane.xlu0 %705
    %v707 = vsel %vm443, %v703, 0.0
    %708 = vadd.xlane.f32.xlu0 %v707
    %v709 = vpop.xlane.xlu0 %708
    %v710 = vpack.c.bf16 %v703, %v701
    %711 = vrot.lane.b32.xlu0 %v359, 112
    %v712 = vpop.permute.xlu0 %711
    %v715 = vsel %vm443, %v710, 0
    %717 = vmatprep.subr.bf16.mxu0 0
    %718 = vmatpush1.bf16.msra.mxu0 %v712
    %719 = vmatprep.subr.bf16.mxu0 0
    %720 = vmatpush1.bf16.msra.mxu0 0
    %721 = vmatprep.subr.bf16.mxu0 0
    %722 = vmatpush1.bf16.msra.mxu0 0
    %723 = vmatprep.subr.bf16.mxu0 0
    %724 = vmatpush1.bf16.msra.mxu0 0
    %725 = vmatprep.subr.bf16.mxu0 0
    %726 = vmatpush1.bf16.msra.mxu0 0
    %727 = vmatprep.subr.bf16.mxu0 0
    %728 = vmatpush1.bf16.msra.mxu0 0
    %729 = vmatprep.subr.bf16.mxu0 0
    %730 = vmatpush1.bf16.msra.mxu0 0
    %731 = vmatprep.subr.bf16.mxu0 0
    %732 = vmatpush1.bf16.msra.mxu0 0
    %733 = vmatprep.subr.bf16.mxu0 0
    %734 = vmatpush1.bf16.msra.mxu0 0
    %735 = vmatprep.subr.bf16.mxu0 0
    %736 = vmatpush1.bf16.msra.mxu0 0
    %737 = vmatprep.subr.bf16.mxu0 0
    %738 = vmatpush1.bf16.msra.mxu0 0
    %739 = vmatprep.subr.bf16.mxu0 0
    %740 = vmatpush1.bf16.msra.mxu0 0
    %741 = vmatprep.subr.bf16.mxu0 0
    %742 = vmatpush1.bf16.msra.mxu0 0
    %743 = vmatprep.subr.bf16.mxu0 0
    %744 = vmatpush1.bf16.msra.mxu0 0
    %745 = vmatprep.subr.bf16.mxu0 0
    %746 = vmatpush1.bf16.msra.mxu0 0
    %747 = vmatprep.subr.bf16.mxu0 0
    %748 = vmatpush1.bf16.msra.mxu0 0
    %749 = vmatprep.mubr.bf16.mxu0 0
    %750 = vmatmul.mubr.bf16.gmra.mrb[0].mxu0 %v715
    %v751 = vpop.f32.mrb[0].mxu0
    %v752 = vadd.f32 0.0, %v751
    %v753 = vpop.f32.mrb[0].mxu0
    %v754 = vpop.f32.mrb[0].mxu0
    %v755 = vadd.f32 0.0, %v754
    %v756 = vpop.f32.mrb[0].mxu0
    %757 = vdwg.mxu0
    %v758 = vrcp.pop %v706
    %v759 = vrcp.pop %v709
    %v760 = vmul.f32 %v752, %v758
    %v761 = vmul.f32 %v755, %v759
    %v762 = vpack.c.bf16 %v761, %v760
    %764 = vrot.lane.b32.xlu0 %v762, 16
    %v765 = vpop.permute.xlu0 %764
    %vm767 = vcmask 195712
    %768 = vst.msk [vmem:[#allocation2] sm:$0xff] %vm767, %v765
    %v769 = vpack.c.bf16 %v380, %v380
    %770 = vrot.lane.b32.xlu0 %v357, 104
    %v771 = vpop.permute.xlu0 %770
    %v773 = vsel %vm394, %v771, 0
    %v776 = vsel %vm398, %v769, 0
    %778 = vmatprep.subr.bf16.mxu0 0
    %779 = vmatpush1.bf16.msra.mxu0 %v776
    %780 = vmatprep.subr.bf16.mxu0 0
    %781 = vmatpush1.bf16.msra.mxu0 0
    %782 = vmatprep.subr.bf16.mxu0 0
    %783 = vmatpush1.bf16.msra.mxu0 0
    %784 = vmatprep.subr.bf16.mxu0 0
    %785 = vmatpush1.bf16.msra.mxu0 0
    %786 = vmatprep.subr.bf16.mxu0 0
    %787 = vmatpush1.bf16.msra.mxu0 0
    %788 = vmatprep.subr.bf16.mxu0 0
    %789 = vmatpush1.bf16.msra.mxu0 0
    %790 = vmatprep.subr.bf16.mxu0 0
    %791 = vmatpush1.bf16.msra.mxu0 0
    %792 = vmatprep.subr.bf16.mxu0 0
    %793 = vmatpush1.bf16.msra.mxu0 0
    %794 = vmatprep.subr.bf16.mxu0 0
    %795 = vmatpush1.bf16.msra.mxu0 0
    %796 = vmatprep.subr.bf16.mxu0 0
    %797 = vmatpush1.bf16.msra.mxu0 0
    %798 = vmatprep.subr.bf16.mxu0 0
    %799 = vmatpush1.bf16.msra.mxu0 0
    %800 = vmatprep.subr.bf16.mxu0 0
    %801 = vmatpush1.bf16.msra.mxu0 0
    %802 = vmatprep.subr.bf16.mxu0 0
    %803 = vmatpush1.bf16.msra.mxu0 0
    %804 = vmatprep.subr.bf16.mxu0 0
    %805 = vmatpush1.bf16.msra.mxu0 0
    %806 = vmatprep.subr.bf16.mxu0 0
    %807 = vmatpush1.bf16.msra.mxu0 0
    %808 = vmatprep.subr.bf16.mxu0 0
    %809 = vmatpush1.bf16.msra.mxu0 0
    %810 = vmatprep.mubr.bf16.mxu0 0
    %811 = vmatmul.mubr.bf16.gmra.mrb[0].mxu0 %v773
    %v812 = vpop.f32.mrb[0].mxu0
    %v813 = vadd.f32 0.0, %v812
    %v814 = vpop.f32.mrb[0].mxu0
    %v815 = vpop.f32.mrb[0].mxu0
    %v816 = vadd.f32 0.0, %v815
    %v817 = vpop.f32.mrb[0].mxu0
    %818 = vdwg.mxu0
    %v819 = vsel %vm443, %v813, -inf
    %820 = vmax.xlane.f32.xlu0 %v819
    %v821 = vpop.xlane.xlu0 %820
    %v822 = vsel %vm443, %v816, -inf
    %823 = vmax.xlane.f32.xlu0 %v822
    %v824 = vpop.xlane.xlu0 %823
    %v825 = vsub.f32 %v813, %v821
    %v826 = vsub.f32 %v816, %v824
    %v827 = vmul.f32 %v825, 1.442695
    %v828 = vpow.pop %v827
    %v829 = vmul.f32 %v826, 1.442695
    %v830 = vpow.pop %v829
    %v831 = vsel %vm443, %v828, 0.0
    %832 = vadd.xlane.f32.xlu0 %v831
    %v833 = vpop.xlane.xlu0 %832
    %v834 = vsel %vm443, %v830, 0.0
    %835 = vadd.xlane.f32.xlu0 %v834
    %v836 = vpop.xlane.xlu0 %835
    %v837 = vpack.c.bf16 %v830, %v828
    %838 = vrot.lane.b32.xlu0 %v359, 104
    %v839 = vpop.permute.xlu0 %838
    %v842 = vsel %vm443, %v837, 0
    %844 = vmatprep.subr.bf16.mxu0 0
    %845 = vmatpush1.bf16.msra.mxu0 %v839
    %846 = vmatprep.subr.bf16.mxu0 0
    %847 = vmatpush1.bf16.msra.mxu0 0
    %848 = vmatprep.subr.bf16.mxu0 0
    %849 = vmatpush1.bf16.msra.mxu0 0
    %850 = vmatprep.subr.bf16.mxu0 0
    %851 = vmatpush1.bf16.msra.mxu0 0
    %852 = vmatprep.subr.bf16.mxu0 0
    %853 = vmatpush1.bf16.msra.mxu0 0
    %854 = vmatprep.subr.bf16.mxu0 0
    %855 = vmatpush1.bf16.msra.mxu0 0
    %856 = vmatprep.subr.bf16.mxu0 0
    %857 = vmatpush1.bf16.msra.mxu0 0
    %858 = vmatprep.subr.bf16.mxu0 0
    %859 = vmatpush1.bf16.msra.mxu0 0
    %860 = vmatprep.subr.bf16.mxu0 0
    %861 = vmatpush1.bf16.msra.mxu0 0
    %862 = vmatprep.subr.bf16.mxu0 0
    %863 = vmatpush1.bf16.msra.mxu0 0
    %864 = vmatprep.subr.bf16.mxu0 0
    %865 = vmatpush1.bf16.msra.mxu0 0
    %866 = vmatprep.subr.bf16.mxu0 0
    %867 = vmatpush1.bf16.msra.mxu0 0
    %868 = vmatprep.subr.bf16.mxu0 0
    %869 = vmatpush1.bf16.msra.mxu0 0
    %870 = vmatprep.subr.bf16.mxu0 0
    %871 = vmatpush1.bf16.msra.mxu0 0
    %872 = vmatprep.subr.bf16.mxu0 0
    %873 = vmatpush1.bf16.msra.mxu0 0
    %874 = vmatprep.subr.bf16.mxu0 0
    %875 = vmatpush1.bf16.msra.mxu0 0
    %876 = vmatprep.mubr.bf16.mxu0 0
    %877 = vmatmul.mubr.bf16.gmra.mrb[0].mxu0 %v842
    %v878 = vpop.f32.mrb[0].mxu0
    %v879 = vadd.f32 0.0, %v878
    %v880 = vpop.f32.mrb[0].mxu0
    %v881 = vpop.f32.mrb[0].mxu0
    %v882 = vadd.f32 0.0, %v881
    %v883 = vpop.f32.mrb[0].mxu0
    %884 = vdwg.mxu0
    %v885 = vrcp.pop %v833
    %v886 = vrcp.pop %v836
    %v887 = vmul.f32 %v879, %v885
    %v888 = vmul.f32 %v882, %v886
    %v889 = vpack.c.bf16 %v888, %v887
    %891 = vrot.lane.b32.xlu0 %v889, 24
    %v892 = vpop.permute.xlu0 %891
    %vm894 = vcmask 261312
    %895 = vst.msk [vmem:[#allocation2] sm:$0xff] %vm894, %v892
    %896 = vxpose.xlu0.b32.start [1/16] %v355, 128
    %897 = vxpose.xlu0.b32.cont [2/16] %v356, 128
    %898 = vxpose.xlu0.b32.cont [3/16] 0.0, 128
    %899 = vxpose.xlu0.b32.cont [4/16] 0.0, 128
    %900 = vxpose.xlu0.b32.cont [5/16] 0.0, 128
    %901 = vxpose.xlu0.b32.cont [6/16] 0.0, 128
    %902 = vxpose.xlu0.b32.cont [7/16] 0.0, 128
    %903 = vxpose.xlu0.b32.cont [8/16] 0.0, 128
    %904 = vxpose.xlu0.b32.cont [9/16] 0.0, 128
    %905 = vxpose.xlu0.b32.cont [10/16] 0.0, 128
    %906 = vxpose.xlu0.b32.cont [11/16] 0.0, 128
    %907 = vxpose.xlu0.b32.cont [12/16] 0.0, 128
    %908 = vxpose.xlu0.b32.cont [13/16] 0.0, 128
    %909 = vxpose.xlu0.b32.cont [14/16] 0.0, 128
    %910 = vxpose.xlu0.b32.cont [15/16] 0.0, 128
    %911 = vxpose.xlu0.b32.end [16/16] 0.0, 128
    %v912 = vpop.trf.xlu0
    %v913 = vpop.trf.xlu0
    %v914 = vpop.trf.xlu0
    %v915 = vpop.trf.xlu0
    %v916 = vpop.trf.xlu0
    %v917 = vpop.trf.xlu0
    %v918 = vpop.trf.xlu0
    %v919 = vpop.trf.xlu0
    %v920 = vpop.trf.xlu0
    %v921 = vpop.trf.xlu0
    %v922 = vpop.trf.xlu0
    %v923 = vpop.trf.xlu0
    %v924 = vpop.trf.xlu0
    %v925 = vpop.trf.xlu0
    %v926 = vpop.trf.xlu0
    %v927 = vpop.trf.xlu0
    %v928 = vpack.c.bf16 %v912, %v912
    %v930 = vsel %vm394, %v358, 0
    %v933 = vsel %vm398, %v928, 0
    %935 = vmatprep.subr.bf16.mxu0 0
    %936 = vmatpush1.bf16.msra.mxu0 %v933
    %937 = vmatprep.subr.bf16.mxu0 0
    %938 = vmatpush1.bf16.msra.mxu0 0
    %939 = vmatprep.subr.bf16.mxu0 0
    %940 = vmatpush1.bf16.msra.mxu0 0
    %941 = vmatprep.subr.bf16.mxu0 0
    %942 = vmatpush1.bf16.msra.mxu0 0
    %943 = vmatprep.subr.bf16.mxu0 0
    %944 = vmatpush1.bf16.msra.mxu0 0
    %945 = vmatprep.subr.bf16.mxu0 0
    %946 = vmatpush1.bf16.msra.mxu0 0
    %947 = vmatprep.subr.bf16.mxu0 0
    %948 = vmatpush1.bf16.msra.mxu0 0
    %949 = vmatprep.subr.bf16.mxu0 0
    %950 = vmatpush1.bf16.msra.mxu0 0
    %951 = vmatprep.subr.bf16.mxu0 0
    %952 = vmatpush1.bf16.msra.mxu0 0
    %953 = vmatprep.subr.bf16.mxu0 0
    %954 = vmatpush1.bf16.msra.mxu0 0
    %955 = vmatprep.subr.bf16.mxu0 0
    %956 = vmatpush1.bf16.msra.mxu0 0
    %957 = vmatprep.subr.bf16.mxu0 0
    %958 = vmatpush1.bf16.msra.mxu0 0
    %959 = vmatprep.subr.bf16.mxu0 0
    %960 = vmatpush1.bf16.msra.mxu0 0
    %961 = vmatprep.subr.bf16.mxu0 0
    %962 = vmatpush1.bf16.msra.mxu0 0
    %963 = vmatprep.subr.bf16.mxu0 0
    %964 = vmatpush1.bf16.msra.mxu0 0
    %965 = vmatprep.subr.bf16.mxu0 0
    %966 = vmatpush1.bf16.msra.mxu0 0
    %967 = vmatprep.mubr.bf16.mxu0 0
    %968 = vmatmul.mubr.bf16.gmra.mrb[0].mxu0 %v930
    %v969 = vpop.f32.mrb[0].mxu0
    %v970 = vadd.f32 0.0, %v969
    %v971 = vpop.f32.mrb[0].mxu0
    %v972 = vpop.f32.mrb[0].mxu0
    %v973 = vadd.f32 0.0, %v972
    %v974 = vpop.f32.mrb[0].mxu0
    %975 = vdwg.mxu0
    %v976 = vsel %vm443, %v970, -inf
    %977 = vmax.xlane.f32.xlu0 %v976
    %v978 = vpop.xlane.xlu0 %977
    %v979 = vsel %vm443, %v973, -inf
    %980 = vmax.xlane.f32.xlu0 %v979
    %v981 = vpop.xlane.xlu0 %980
    %v982 = vsub.f32 %v970, %v978
    %v983 = vsub.f32 %v973, %v981
    %v984 = vmul.f32 %v982, 1.442695
    %v985 = vpow.pop %v984
    %v986 = vmul.f32 %v983, 1.442695
    %v987 = vpow.pop %v986
    %v988 = vsel %vm443, %v985, 0.0
    %989 = vadd.xlane.f32.xlu0 %v988
    %v990 = vpop.xlane.xlu0 %989
    %v991 = vsel %vm443, %v987, 0.0
    %992 = vadd.xlane.f32.xlu0 %v991
    %v993 = vpop.xlane.xlu0 %992
    %v994 = vpack.c.bf16 %v987, %v985
    %v996 = vsel %vm443, %v994, 0
    %998 = vmatprep.subr.bf16.mxu0 0
    %999 = vmatpush1.bf16.msra.mxu0 %v360
    %1000 = vmatprep.subr.bf16.mxu0 0
    %1001 = vmatpush1.bf16.msra.mxu0 0
    %1002 = vmatprep.subr.bf16.mxu0 0
    %1003 = vmatpush1.bf16.msra.mxu0 0
    %1004 = vmatprep.subr.bf16.mxu0 0
    %1005 = vmatpush1.bf16.msra.mxu0 0
    %1006 = vmatprep.subr.bf16.mxu0 0
    %1007 = vmatpush1.bf16.msra.mxu0 0
    %1008 = vmatprep.subr.bf16.mxu0 0
    %1009 = vmatpush1.bf16.msra.mxu0 0
    %1010 = vmatprep.subr.bf16.mxu0 0
    %1011 = vmatpush1.bf16.msra.mxu0 0
    %1012 = vmatprep.subr.bf16.mxu0 0
    %1013 = vmatpush1.bf16.msra.mxu0 0
    %1014 = vmatprep.subr.bf16.mxu0 0
    %1015 = vmatpush1.bf16.msra.mxu0 0
    %1016 = vmatprep.subr.bf16.mxu0 0
    %1017 = vmatpush1.bf16.msra.mxu0 0
    %1018 = vmatprep.subr.bf16.mxu0 0
    %1019 = vmatpush1.bf16.msra.mxu0 0
    %1020 = vmatprep.subr.bf16.mxu0 0
    %1021 = vmatpush1.bf16.msra.mxu0 0
    %1022 = vmatprep.subr.bf16.mxu0 0
    %1023 = vmatpush1.bf16.msra.mxu0 0
    %1024 = vmatprep.subr.bf16.mxu0 0
    %1025 = vmatpush1.bf16.msra.mxu0 0
    %1026 = vmatprep.subr.bf16.mxu0 0
    %1027 = vmatpush1.bf16.msra.mxu0 0
    %1028 = vmatprep.subr.bf16.mxu0 0
    %1029 = vmatpush1.bf16.msra.mxu0 0
    %1030 = vmatprep.mubr.bf16.mxu0 0
    %1031 = vmatmul.mubr.bf16.gmra.mrb[0].mxu0 %v996
    %v1032 = vpop.f32.mrb[0].mxu0
    %v1033 = vadd.f32 0.0, %v1032
    %v1034 = vpop.f32.mrb[0].mxu0
    %v1035 = vpop.f32.mrb[0].mxu0
    %v1036 = vadd.f32 0.0, %v1035
    %v1037 = vpop.f32.mrb[0].mxu0
    %1038 = vdwg.mxu0
    %v1039 = vrcp.pop %v990
    %v1040 = vrcp.pop %v993
    %v1041 = vmul.f32 %v1033, %v1039
    %v1042 = vmul.f32 %v1036, %v1040
    %v1043 = vpack.c.bf16 %v1042, %v1041
    %1044 = vst.msk [vmem:[#allocation2 + $0x8] sm:$0xff] %vm394, %v1043
    %v1045 = vpack.c.bf16 %v913, %v913
    %1047 = vrot.lane.b32.xlu0 %v358, 120
    %v1048 = vpop.permute.xlu0 %1047
    %v1050 = vsel %vm394, %v1048, 0
    %v1053 = vsel %vm398, %v1045, 0
    %1055 = vmatprep.subr.bf16.mxu0 0
    %1056 = vmatpush1.bf16.msra.mxu0 %v1053
    %1057 = vmatprep.subr.bf16.mxu0 0
    %1058 = vmatpush1.bf16.msra.mxu0 0
    %1059 = vmatprep.subr.bf16.mxu0 0
    %1060 = vmatpush1.bf16.msra.mxu0 0
    %1061 = vmatprep.subr.bf16.mxu0 0
    %1062 = vmatpush1.bf16.msra.mxu0 0
    %1063 = vmatprep.subr.bf16.mxu0 0
    %1064 = vmatpush1.bf16.msra.mxu0 0
    %1065 = vmatprep.subr.bf16.mxu0 0
    %1066 = vmatpush1.bf16.msra.mxu0 0
    %1067 = vmatprep.subr.bf16.mxu0 0
    %1068 = vmatpush1.bf16.msra.mxu0 0
    %1069 = vmatprep.subr.bf16.mxu0 0
    %1070 = vmatpush1.bf16.msra.mxu0 0
    %1071 = vmatprep.subr.bf16.mxu0 0
    %1072 = vmatpush1.bf16.msra.mxu0 0
    %1073 = vmatprep.subr.bf16.mxu0 0
    %1074 = vmatpush1.bf16.msra.mxu0 0
    %1075 = vmatprep.subr.bf16.mxu0 0
    %1076 = vmatpush1.bf16.msra.mxu0 0
    %1077 = vmatprep.subr.bf16.mxu0 0
    %1078 = vmatpush1.bf16.msra.mxu0 0
    %1079 = vmatprep.subr.bf16.mxu0 0
    %1080 = vmatpush1.bf16.msra.mxu0 0
    %1081 = vmatprep.subr.bf16.mxu0 0
    %1082 = vmatpush1.bf16.msra.mxu0 0
    %1083 = vmatprep.subr.bf16.mxu0 0
    %1084 = vmatpush1.bf16.msra.mxu0 0
    %1085 = vmatprep.subr.bf16.mxu0 0
    %1086 = vmatpush1.bf16.msra.mxu0 0
    %1087 = vmatprep.mubr.bf16.mxu0 0
    %1088 = vmatmul.mubr.bf16.gmra.mrb[0].mxu0 %v1050
    %v1089 = vpop.f32.mrb[0].mxu0
    %v1090 = vadd.f32 0.0, %v1089
    %v1091 = vpop.f32.mrb[0].mxu0
    %v1092 = vpop.f32.mrb[0].mxu0
    %v1093 = vadd.f32 0.0, %v1092
    %v1094 = vpop.f32.mrb[0].mxu0
    %1095 = vdwg.mxu0
    %v1096 = vsel %vm443, %v1090, -inf
    %1097 = vmax.xlane.f32.xlu0 %v1096
    %v1098 = vpop.xlane.xlu0 %1097
    %v1099 = vsel %vm443, %v1093, -inf
    %1100 = vmax.xlane.f32.xlu0 %v1099
    %v1101 = vpop.xlane.xlu0 %1100
    %v1102 = vsub.f32 %v1090, %v1098
    %v1103 = vsub.f32 %v1093, %v1101
    %v1104 = vmul.f32 %v1102, 1.442695
    %v1105 = vpow.pop %v1104
    %v1106 = vmul.f32 %v1103, 1.442695
    %v1107 = vpow.pop %v1106
    %v1108 = vsel %vm443, %v1105, 0.0
    %1109 = vadd.xlane.f32.xlu0 %v1108
    %v1110 = vpop.xlane.xlu0 %1109
    %v1111 = vsel %vm443, %v1107, 0.0
    %1112 = vadd.xlane.f32.xlu0 %v1111
    %v1113 = vpop.xlane.xlu0 %1112
    %v1114 = vpack.c.bf16 %v1107, %v1105
    %1116 = vrot.lane.b32.xlu0 %v360, 120
    %v1117 = vpop.permute.xlu0 %1116
    %v1120 = vsel %vm443, %v1114, 0
    %1122 = vmatprep.subr.bf16.mxu0 0
    %1123 = vmatpush1.bf16.msra.mxu0 %v1117
    %1124 = vmatprep.subr.bf16.mxu0 0
    %1125 = vmatpush1.bf16.msra.mxu0 0
    %1126 = vmatprep.subr.bf16.mxu0 0
    %1127 = vmatpush1.bf16.msra.mxu0 0
    %1128 = vmatprep.subr.bf16.mxu0 0
    %1129 = vmatpush1.bf16.msra.mxu0 0
    %1130 = vmatprep.subr.bf16.mxu0 0
    %1131 = vmatpush1.bf16.msra.mxu0 0
    %1132 = vmatprep.subr.bf16.mxu0 0
    %1133 = vmatpush1.bf16.msra.mxu0 0
    %1134 = vmatprep.subr.bf16.mxu0 0
    %1135 = vmatpush1.bf16.msra.mxu0 0
    %1136 = vmatprep.subr.bf16.mxu0 0
    %1137 = vmatpush1.bf16.msra.mxu0 0
    %1138 = vmatprep.subr.bf16.mxu0 0
    %1139 = vmatpush1.bf16.msra.mxu0 0
    %1140 = vmatprep.subr.bf16.mxu0 0
    %1141 = vmatpush1.bf16.msra.mxu0 0
    %1142 = vmatprep.subr.bf16.mxu0 0
    %1143 = vmatpush1.bf16.msra.mxu0 0
    %1144 = vmatprep.subr.bf16.mxu0 0
    %1145 = vmatpush1.bf16.msra.mxu0 0
    %1146 = vmatprep.subr.bf16.mxu0 0
    %1147 = vmatpush1.bf16.msra.mxu0 0
    %1148 = vmatprep.subr.bf16.mxu0 0
    %1149 = vmatpush1.bf16.msra.mxu0 0
    %1150 = vmatprep.subr.bf16.mxu0 0
    %1151 = vmatpush1.bf16.msra.mxu0 0
    %1152 = vmatprep.subr.bf16.mxu0 0
    %1153 = vmatpush1.bf16.msra.mxu0 0
    %1154 = vmatprep.mubr.bf16.mxu0 0
    %1155 = vmatmul.mubr.bf16.gmra.mrb[0].mxu0 %v1120
    %v1156 = vpop.f32.mrb[0].mxu0
    %v1157 = vadd.f32 0.0, %v1156
    %v1158 = vpop.f32.mrb[0].mxu0
    %v1159 = vpop.f32.mrb[0].mxu0
    %v1160 = vadd.f32 0.0, %v1159
    %v1161 = vpop.f32.mrb[0].mxu0
    %1162 = vdwg.mxu0
    %v1163 = vrcp.pop %v1110
    %v1164 = vrcp.pop %v1113
    %v1165 = vmul.f32 %v1157, %v1163
    %v1166 = vmul.f32 %v1160, %v1164
    %v1167 = vpack.c.bf16 %v1166, %v1165
    %1169 = vrot.lane.b32.xlu0 %v1167, 8
    %v1170 = vpop.permute.xlu0 %1169
    %1172 = vst.msk [vmem:[#allocation2 + $0x8] sm:$0xff] %vm640, %v1170
    %v1173 = vpack.c.bf16 %v914, %v914
    %1174 = vrot.lane.b32.xlu0 %v358, 112
    %v1175 = vpop.permute.xlu0 %1174
    %v1177 = vsel %vm394, %v1175, 0
    %v1180 = vsel %vm398, %v1173, 0
    %1182 = vmatprep.subr.bf16.mxu0 0
    %1183 = vmatpush1.bf16.msra.mxu0 %v1180
    %1184 = vmatprep.subr.bf16.mxu0 0
    %1185 = vmatpush1.bf16.msra.mxu0 0
    %1186 = vmatprep.subr.bf16.mxu0 0
    %1187 = vmatpush1.bf16.msra.mxu0 0
    %1188 = vmatprep.subr.bf16.mxu0 0
    %1189 = vmatpush1.bf16.msra.mxu0 0
    %1190 = vmatprep.subr.bf16.mxu0 0
    %1191 = vmatpush1.bf16.msra.mxu0 0
    %1192 = vmatprep.subr.bf16.mxu0 0
    %1193 = vmatpush1.bf16.msra.mxu0 0
    %1194 = vmatprep.subr.bf16.mxu0 0
    %1195 = vmatpush1.bf16.msra.mxu0 0
    %1196 = vmatprep.subr.bf16.mxu0 0
    %1197 = vmatpush1.bf16.msra.mxu0 0
    %1198 = vmatprep.subr.bf16.mxu0 0
    %1199 = vmatpush1.bf16.msra.mxu0 0
    %1200 = vmatprep.subr.bf16.mxu0 0
    %1201 = vmatpush1.bf16.msra.mxu0 0
    %1202 = vmatprep.subr.bf16.mxu0 0
    %1203 = vmatpush1.bf16.msra.mxu0 0
    %1204 = vmatprep.subr.bf16.mxu0 0
    %1205 = vmatpush1.bf16.msra.mxu0 0
    %1206 = vmatprep.subr.bf16.mxu0 0
    %1207 = vmatpush1.bf16.msra.mxu0 0
    %1208 = vmatprep.subr.bf16.mxu0 0
    %1209 = vmatpush1.bf16.msra.mxu0 0
    %1210 = vmatprep.subr.bf16.mxu0 0
    %1211 = vmatpush1.bf16.msra.mxu0 0
    %1212 = vmatprep.subr.bf16.mxu0 0
    %1213 = vmatpush1.bf16.msra.mxu0 0
    %1214 = vmatprep.mubr.bf16.mxu0 0
    %1215 = vmatmul.mubr.bf16.gmra.mrb[0].mxu0 %v1177
    %v1216 = vpop.f32.mrb[0].mxu0
    %v1217 = vadd.f32 0.0, %v1216
    %v1218 = vpop.f32.mrb[0].mxu0
    %v1219 = vpop.f32.mrb[0].mxu0
    %v1220 = vadd.f32 0.0, %v1219
    %v1221 = vpop.f32.mrb[0].mxu0
    %1222 = vdwg.mxu0
    %v1223 = vsel %vm443, %v1217, -inf
    %1224 = vmax.xlane.f32.xlu0 %v1223
    %v1225 = vpop.xlane.xlu0 %1224
    %v1226 = vsel %vm443, %v1220, -inf
    %1227 = vmax.xlane.f32.xlu0 %v1226
    %v1228 = vpop.xlane.xlu0 %1227
    %v1229 = vsub.f32 %v1217, %v1225
    %v1230 = vsub.f32 %v1220, %v1228
    %v1231 = vmul.f32 %v1229, 1.442695
    %v1232 = vpow.pop %v1231
    %v1233 = vmul.f32 %v1230, 1.442695
    %v1234 = vpow.pop %v1233
    %v1235 = vsel %vm443, %v1232, 0.0
    %1236 = vadd.xlane.f32.xlu0 %v1235
    %v1237 = vpop.xlane.xlu0 %1236
    %v1238 = vsel %vm443, %v1234, 0.0
    %1239 = vadd.xlane.f32.xlu0 %v1238
    %v1240 = vpop.xlane.xlu0 %1239
    %v1241 = vpack.c.bf16 %v1234, %v1232
    %1242 = vrot.lane.b32.xlu0 %v360, 112
    %v1243 = vpop.permute.xlu0 %1242
    %v1246 = vsel %vm443, %v1241, 0
    %1248 = vmatprep.subr.bf16.mxu0 0
    %1249 = vmatpush1.bf16.msra.mxu0 %v1243
    %1250 = vmatprep.subr.bf16.mxu0 0
    %1251 = vmatpush1.bf16.msra.mxu0 0
    %1252 = vmatprep.subr.bf16.mxu0 0
    %1253 = vmatpush1.bf16.msra.mxu0 0
    %1254 = vmatprep.subr.bf16.mxu0 0
    %1255 = vmatpush1.bf16.msra.mxu0 0
    %1256 = vmatprep.subr.bf16.mxu0 0
    %1257 = vmatpush1.bf16.msra.mxu0 0
    %1258 = vmatprep.subr.bf16.mxu0 0
    %1259 = vmatpush1.bf16.msra.mxu0 0
    %1260 = vmatprep.subr.bf16.mxu0 0
    %1261 = vmatpush1.bf16.msra.mxu0 0
    %1262 = vmatprep.subr.bf16.mxu0 0
    %1263 = vmatpush1.bf16.msra.mxu0 0
    %1264 = vmatprep.subr.bf16.mxu0 0
    %1265 = vmatpush1.bf16.msra.mxu0 0
    %1266 = vmatprep.subr.bf16.mxu0 0
    %1267 = vmatpush1.bf16.msra.mxu0 0
    %1268 = vmatprep.subr.bf16.mxu0 0
    %1269 = vmatpush1.bf16.msra.mxu0 0
    %1270 = vmatprep.subr.bf16.mxu0 0
    %1271 = vmatpush1.bf16.msra.mxu0 0
    %1272 = vmatprep.subr.bf16.mxu0 0
    %1273 = vmatpush1.bf16.msra.mxu0 0
    %1274 = vmatprep.subr.bf16.mxu0 0
    %1275 = vmatpush1.bf16.msra.mxu0 0
    %1276 = vmatprep.subr.bf16.mxu0 0
    %1277 = vmatpush1.bf16.msra.mxu0 0
    %1278 = vmatprep.subr.bf16.mxu0 0
    %1279 = vmatpush1.bf16.msra.mxu0 0
    %1280 = vmatprep.mubr.bf16.mxu0 0
    %1281 = vmatmul.mubr.bf16.gmra.mrb[0].mxu0 %v1246
    %v1282 = vpop.f32.mrb[0].mxu0
    %v1283 = vadd.f32 0.0, %v1282
    %v1284 = vpop.f32.mrb[0].mxu0
    %v1285 = vpop.f32.mrb[0].mxu0
    %v1286 = vadd.f32 0.0, %v1285
    %v1287 = vpop.f32.mrb[0].mxu0
    %1288 = vdwg.mxu0
    %v1289 = vrcp.pop %v1237
    %v1290 = vrcp.pop %v1240
    %v1291 = vmul.f32 %v1283, %v1289
    %v1292 = vmul.f32 %v1286, %v1290
    %v1293 = vpack.c.bf16 %v1292, %v1291
    %1295 = vrot.lane.b32.xlu0 %v1293, 16
    %v1296 = vpop.permute.xlu0 %1295
    %1298 = vst.msk [vmem:[#allocation2 + $0x8] sm:$0xff] %vm767, %v1296
    %v1299 = vpack.c.bf16 %v915, %v915
    %1300 = vrot.lane.b32.xlu0 %v358, 104
    %v1301 = vpop.permute.xlu0 %1300
    %v1303 = vsel %vm394, %v1301, 0
    %v1306 = vsel %vm398, %v1299, 0
    %1308 = vmatprep.subr.bf16.mxu0 0
    %1309 = vmatpush1.bf16.msra.mxu0 %v1306
    %1310 = vmatprep.subr.bf16.mxu0 0
    %1311 = vmatpush1.bf16.msra.mxu0 0
    %1312 = vmatprep.subr.bf16.mxu0 0
    %1313 = vmatpush1.bf16.msra.mxu0 0
    %1314 = vmatprep.subr.bf16.mxu0 0
    %1315 = vmatpush1.bf16.msra.mxu0 0
    %1316 = vmatprep.subr.bf16.mxu0 0
    %1317 = vmatpush1.bf16.msra.mxu0 0
    %1318 = vmatprep.subr.bf16.mxu0 0
    %1319 = vmatpush1.bf16.msra.mxu0 0
    %1320 = vmatprep.subr.bf16.mxu0 0
    %1321 = vmatpush1.bf16.msra.mxu0 0
    %1322 = vmatprep.subr.bf16.mxu0 0
    %1323 = vmatpush1.bf16.msra.mxu0 0
    %1324 = vmatprep.subr.bf16.mxu0 0
    %1325 = vmatpush1.bf16.msra.mxu0 0
    %1326 = vmatprep.subr.bf16.mxu0 0
    %1327 = vmatpush1.bf16.msra.mxu0 0
    %1328 = vmatprep.subr.bf16.mxu0 0
    %1329 = vmatpush1.bf16.msra.mxu0 0
    %1330 = vmatprep.subr.bf16.mxu0 0
    %1331 = vmatpush1.bf16.msra.mxu0 0
    %1332 = vmatprep.subr.bf16.mxu0 0
    %1333 = vmatpush1.bf16.msra.mxu0 0
    %1334 = vmatprep.subr.bf16.mxu0 0
    %1335 = vmatpush1.bf16.msra.mxu0 0
    %1336 = vmatprep.subr.bf16.mxu0 0
    %1337 = vmatpush1.bf16.msra.mxu0 0
    %1338 = vmatprep.subr.bf16.mxu0 0
    %1339 = vmatpush1.bf16.msra.mxu0 0
    %1340 = vmatprep.mubr.bf16.mxu0 0
    %1341 = vmatmul.mubr.bf16.gmra.mrb[0].mxu0 %v1303
    %v1342 = vpop.f32.mrb[0].mxu0
    %v1343 = vadd.f32 0.0, %v1342
    %v1344 = vpop.f32.mrb[0].mxu0
    %v1345 = vpop.f32.mrb[0].mxu0
    %v1346 = vadd.f32 0.0, %v1345
    %v1347 = vpop.f32.mrb[0].mxu0
    %1348 = vdwg.mxu0
    %v1349 = vsel %vm443, %v1343, -inf
    %1350 = vmax.xlane.f32.xlu0 %v1349
    %v1351 = vpop.xlane.xlu0 %1350
    %v1352 = vsel %vm443, %v1346, -inf
    %1353 = vmax.xlane.f32.xlu0 %v1352
    %v1354 = vpop.xlane.xlu0 %1353
    %v1355 = vsub.f32 %v1343, %v1351
    %v1356 = vsub.f32 %v1346, %v1354
    %v1357 = vmul.f32 %v1355, 1.442695
    %v1358 = vpow.pop %v1357
    %v1359 = vmul.f32 %v1356, 1.442695
    %v1360 = vpow.pop %v1359
    %v1361 = vsel %vm443, %v1358, 0.0
    %1362 = vadd.xlane.f32.xlu0 %v1361
    %v1363 = vpop.xlane.xlu0 %1362
    %v1364 = vsel %vm443, %v1360, 0.0
    %1365 = vadd.xlane.f32.xlu0 %v1364
    %v1366 = vpop.xlane.xlu0 %1365
    %v1367 = vpack.c.bf16 %v1360, %v1358
    %1368 = vrot.lane.b32.xlu0 %v360, 104
    %v1369 = vpop.permute.xlu0 %1368
    %v1372 = vsel %vm443, %v1367, 0
    %1374 = vmatprep.subr.bf16.mxu0 0
    %1375 = vmatpush1.bf16.msra.mxu0 %v1369
    %1376 = vmatprep.subr.bf16.mxu0 0
    %1377 = vmatpush1.bf16.msra.mxu0 0
    %1378 = vmatprep.subr.bf16.mxu0 0
    %1379 = vmatpush1.bf16.msra.mxu0 0
    %1380 = vmatprep.subr.bf16.mxu0 0
    %1381 = vmatpush1.bf16.msra.mxu0 0
    %1382 = vmatprep.subr.bf16.mxu0 0
    %1383 = vmatpush1.bf16.msra.mxu0 0
    %1384 = vmatprep.subr.bf16.mxu0 0
    %1385 = vmatpush1.bf16.msra.mxu0 0
    %1386 = vmatprep.subr.bf16.mxu0 0
    %1387 = vmatpush1.bf16.msra.mxu0 0
    %1388 = vmatprep.subr.bf16.mxu0 0
    %1389 = vmatpush1.bf16.msra.mxu0 0
    %1390 = vmatprep.subr.bf16.mxu0 0
    %1391 = vmatpush1.bf16.msra.mxu0 0
    %1392 = vmatprep.subr.bf16.mxu0 0
    %1393 = vmatpush1.bf16.msra.mxu0 0
    %1394 = vmatprep.subr.bf16.mxu0 0
    %1395 = vmatpush1.bf16.msra.mxu0 0
    %1396 = vmatprep.subr.bf16.mxu0 0
    %1397 = vmatpush1.bf16.msra.mxu0 0
    %1398 = vmatprep.subr.bf16.mxu0 0
    %1399 = vmatpush1.bf16.msra.mxu0 0
    %1400 = vmatprep.subr.bf16.mxu0 0
    %1401 = vmatpush1.bf16.msra.mxu0 0
    %1402 = vmatprep.subr.bf16.mxu0 0
    %1403 = vmatpush1.bf16.msra.mxu0 0
    %1404 = vmatprep.subr.bf16.mxu0 0
    %1405 = vmatpush1.bf16.msra.mxu0 0
    %1406 = vmatprep.mubr.bf16.mxu0 0
    %1407 = vmatmul.mubr.bf16.gmra.mrb[0].mxu0 %v1372
    %v1408 = vpop.f32.mrb[0].mxu0
    %v1409 = vadd.f32 0.0, %v1408
    %v1410 = vpop.f32.mrb[0].mxu0
    %v1411 = vpop.f32.mrb[0].mxu0
    %v1412 = vadd.f32 0.0, %v1411
    %v1413 = vpop.f32.mrb[0].mxu0
    %1414 = vdwg.mxu0
    %v1415 = vrcp.pop %v1363
    %v1416 = vrcp.pop %v1366
    %v1417 = vmul.f32 %v1409, %v1415
    %v1418 = vmul.f32 %v1412, %v1416
    %v1419 = vpack.c.bf16 %v1418, %v1417
    %1421 = vrot.lane.b32.xlu0 %v1419, 24
    %v1422 = vpop.permute.xlu0 %1421
    %1424 = vst.msk [vmem:[#allocation2 + $0x8] sm:$0xff] %vm894, %v1422
    %v1425 = vld [vmem:[#allocation2] sm:$0xff]
    %v1426 = vld [vmem:[#allocation2 + $0x8] sm:$0xff]
    %v1427 = vld [vmem:[#allocation11] sm:$0xf]
    %v1428 = vld [vmem:[#allocation11 + $0x4] sm:$0xf]
    %v1429 = vld [vmem:[#allocation11 + $0x8] sm:$0xf]
    %v1430 = vld [vmem:[#allocation11 + $0xc] sm:$0xf]
    %v1431 = vld [vmem:[%s5] sm:$0x1]
    %v1433 = vlaneseq
    %v1434 = vshrl.u32 %v1433, 7
    %v1435 = vsub.s32 0, %v1434
    %v1436 = vrot.slane %v1431, %v1435
    %v1442 = vunpack.c.l.b16 %v1427
    %v1443 = vunpack.c.l.b16 %v1428
    %v1444 = vunpack.c.l.b16 %v1429
    %v1445 = vunpack.c.l.b16 %v1430
    %v1446 = vpack.c.b16 %v1443, %v1442
    %v1447 = vpack.c.b16 %v1445, %v1444
    %v1451 = vsel %vm163, %v1425, 0
    %v1454 = vsel %vm163, %v1426, 0
    %1456 = vmatprep.subr.bf16.mxu0 0
    %1457 = vmatpush1.bf16.msra.mxu0 %v1446
    %1458 = vmatprep.subr.bf16.mxu0 0
    %1459 = vmatpush1.bf16.msra.mxu0 %v1447
    %1460 = vmatprep.subr.bf16.mxu0 0
    %1461 = vmatpush1.bf16.msra.mxu0 0
    %1462 = vmatprep.subr.bf16.mxu0 0
    %1463 = vmatpush1.bf16.msra.mxu0 0
    %1464 = vmatprep.subr.bf16.mxu0 0
    %1465 = vmatpush1.bf16.msra.mxu0 0
    %1466 = vmatprep.subr.bf16.mxu0 0
    %1467 = vmatpush1.bf16.msra.mxu0 0
    %1468 = vmatprep.subr.bf16.mxu0 0
    %1469 = vmatpush1.bf16.msra.mxu0 0
    %1470 = vmatprep.subr.bf16.mxu0 0
    %1471 = vmatpush1.bf16.msra.mxu0 0
    %1472 = vmatprep.subr.bf16.mxu0 0
    %1473 = vmatpush1.bf16.msra.mxu0 0
    %1474 = vmatprep.subr.bf16.mxu0 0
    %1475 = vmatpush1.bf16.msra.mxu0 0
    %1476 = vmatprep.subr.bf16.mxu0 0
    %1477 = vmatpush1.bf16.msra.mxu0 0
    %1478 = vmatprep.subr.bf16.mxu0 0
    %1479 = vmatpush1.bf16.msra.mxu0 0
    %1480 = vmatprep.subr.bf16.mxu0 0
    %1481 = vmatpush1.bf16.msra.mxu0 0
    %1482 = vmatprep.subr.bf16.mxu0 0
    %1483 = vmatpush1.bf16.msra.mxu0 0
    %1484 = vmatprep.subr.bf16.mxu0 0
    %1485 = vmatpush1.bf16.msra.mxu0 0
    %1486 = vmatprep.subr.bf16.mxu0 0
    %1487 = vmatpush1.bf16.msra.mxu0 0
    %1488 = vmatprep.mubr.bf16.mxu0 0
    %1489 = vmatmul.mubr.bf16.gmra.mrb[0].mxu0 %v1451
    %v1490 = vpop.f32.mrb[0].mxu0
    %v1491 = vadd.f32 %v1436, %v1490
    %v1492 = vpop.f32.mrb[0].mxu0
    %v1493 = vpop.f32.mrb[0].mxu0
    %v1494 = vadd.f32 %v1436, %v1493
    %v1495 = vpop.f32.mrb[0].mxu0
    %1496 = vmatprep.mubr.bf16.mxu0 0
    %1497 = vmatmul.mubr.bf16.gmra.mrb[0].mxu0 %v1454
    %v1498 = vpop.f32.mrb[0].mxu0
    %v1499 = vadd.f32 %v1436, %v1498
    %v1500 = vpop.f32.mrb[0].mxu0
    %v1501 = vpop.f32.mrb[0].mxu0
    %v1502 = vadd.f32 %v1436, %v1501
    %v1503 = vpop.f32.mrb[0].mxu0
    %1504 = vdwg.mxu0
    %1505 = vst.msk [vmem:[#allocation12] sm:$0xff] %vm163, %v1491
    %1506 = vst.msk [vmem:[#allocation12 + $0x8] sm:$0xff] %vm163, %v1494
    %1507 = vst.msk [vmem:[#allocation12 + $0x10] sm:$0xff] %vm163, %v1499
    %1508 = vst.msk [vmem:[#allocation12 + $0x18] sm:$0xff] %vm163, %v1502
    // Predicated region
    $region46: #{tpu_custom_call.1} parent=1 // pred_check
      _
    $region47: #{tpu_custom_call.1} parent=1 // pred_check_branch
      %1510 = sbr.rel (0) target = $region49
    $region48: #{tpu_custom_call.1} parent=1 // pred_region
      %s1512 = ssub.s32 512, 512
      %1513 = vsyncadd [#allocation5], %s1512
      %s1514 = sshll.u32 [#allocation12], 4
      %s1515 = int_to_ptr.vmem [resolvable:$true] %s1514
      %1520 = dma.vmem_to_hbm [thread:$0]  %s1515, 512, %s6, [#allocation5], 128, 128, 8
    $region49: #{tpu_custom_call.1} parent=1 // pred_fallthru
      _
    // Predicated region
    $region50: #{tpu_custom_call.1} parent=1 // pred_check
      _
    $region51: #{tpu_custom_call.1} parent=1 // pred_check_branch
      %1522 = sbr.rel (0) target = $region53
    $region52: #{tpu_custom_call.1} parent=1 // pred_region
      %1523 = dma.done [#allocation5], 512
    $region53: #{tpu_custom_call.1} parent=1 // pred_fallthru
      _
    %1524 = vsyncpa [#allocation4], 1
    %1525 = vsyncpa [#allocation7], 1
    %1526 = vsyncpa [#allocation10], 1
    %1527 = vsyncpa [#allocation5], 1

</llo_original>
